<compile_context>
chip_gen: v5e
topology: v5e:2x2
jax: 0.10.0
libtpu: 0.0.40
codegen_flags: <defaults>
</compile_context>

<pallas_src>
import jax
import jax.numpy as jnp
from jax.experimental import pallas as pl
from jax.experimental.pallas import tpu as pltpu

LN_EPS = 1e-5  # PyTorch nn.LayerNorm default eps


def _round_up(x, m):
    return (x + m - 1) // m * m


def _layernorm_relu(h, gamma, beta):
    """Single-pass LayerNorm (population variance, eps inside rsqrt) + ReLU."""
    d = h.shape[-1]
    inv_d = 1.0 / d
    s1 = jnp.sum(h, axis=-1, keepdims=True)
    s2 = jnp.sum(h * h, axis=-1, keepdims=True)
    mu = s1 * inv_d
    var = jnp.maximum(s2 * inv_d - mu * mu, 0.0)
    y = (h - mu) * jax.lax.rsqrt(var + LN_EPS) * gamma + beta
    return jnp.maximum(y, 0.0)


def custom_ae_kernel(
    x_ref,
    w1_ref, b1_ref, g1_ref, be1_ref,
    w2_ref, b2_ref, g2_ref, be2_ref,
    w3_ref, b3_ref, g3_ref, be3_ref,
    w4_ref, b4_ref,
    o_ref,
):
    h = x_ref[...]  # f32 (TB, latent)

    # Layer 1: Linear -> LayerNorm -> ReLU   (bf16 weights upcast in-register)
    h = jnp.dot(h, w1_ref[...].astype(jnp.float32),
                preferred_element_type=jnp.float32) + b1_ref[...]
    h = _layernorm_relu(h, g1_ref[...], be1_ref[...])

    # Layer 2
    h = jnp.dot(h, w2_ref[...].astype(jnp.float32),
                preferred_element_type=jnp.float32) + b2_ref[...]
    h = _layernorm_relu(h, g2_ref[...], be2_ref[...])

    # Layer 3
    h = jnp.dot(h, w3_ref[...].astype(jnp.float32),
                preferred_element_type=jnp.float32) + b3_ref[...]
    h = _layernorm_relu(h, g3_ref[...], be3_ref[...])

    # Layer 4: Linear -> Sigmoid  (output lanes padded to 128-multiple)
    h = jnp.dot(h, w4_ref[...].astype(jnp.float32),
                preferred_element_type=jnp.float32) + b4_ref[...]
    o_ref[...] = jax.nn.sigmoid(h)


def init_params(key, latent_dim, target_dim):
    """Synthetic parameters; Linear weights stored (in, out) and cast to bf16."""
    dims = [(latent_dim, 600), (600, 200), (200, 100), (100, target_dim)]
    params = []
    for i, (din, dout) in enumerate(dims):
        kw, kb = jax.random.split(jax.random.fold_in(key, i))
        bound = 1.0 / jnp.sqrt(jnp.float32(din))
        w = jax.random.uniform(kw, (din, dout), jnp.float32, -bound, bound)
        b = jax.random.uniform(kb, (1, dout), jnp.float32, -bound, bound)
        params.append((w.astype(jnp.bfloat16), b))
    # LayerNorm affine params (PyTorch default init: gamma=1, beta=0), f32.
    ln = [(jnp.ones((1, d), jnp.float32), jnp.zeros((1, d), jnp.float32))
          for d in (600, 200, 100)]
    return params, ln


def custom_ae_forward(x, params, ln):
    """x: (B, ...) flattened like nn.Flatten; returns (B, target_dim) f32."""
    B = x.shape[0]
    x2d = x.reshape(B, -1).astype(jnp.float32)
    latent_dim = x2d.shape[1]
    (w1, b1), (w2, b2), (w3, b3), (w4, b4) = params
    (g1, be1), (g2, be2), (g3, be3) = ln
    target_dim = w4.shape[1]

    # --- padding for TPU-friendly tiles -------------------------------------
    # Batch tile: MXU-height when the batch is big, otherwise the minimal
    # sublane-aligned tile.  Batch padded to a multiple of TB.
    TB = min(128, _round_up(B, 8))
    B_pad = _round_up(B, TB)
    if B_pad != B:
        x2d = jnp.pad(x2d, ((0, B_pad - B), (0, 0)))

    # Lane-dense output: pad target columns (and w4/b4) to a 128 multiple.
    out_pad = _round_up(target_dim, 128)
    if out_pad != target_dim:
        w4p = jnp.pad(w4, ((0, 0), (0, out_pad - target_dim)))
        b4p = jnp.pad(b4, ((0, 0), (0, out_pad - target_dim)))
    else:
        w4p, b4p = w4, b4

    operands = (x2d,
                w1, b1, g1, be1,
                w2, b2, g2, be2,
                w3, b3, g3, be3,
                w4p, b4p)

    grid = (B_pad // TB,)

    def const_spec(a):
        # Full-array block, same block every grid step -> stays VMEM-resident.
        return pl.BlockSpec(a.shape, lambda i: (0, 0))

    in_specs = [pl.BlockSpec((TB, latent_dim), lambda i: (i, 0))]  # x: batch-tiled
    in_specs += [const_spec(a) for a in operands[1:]]
    out_specs = pl.BlockSpec((TB, out_pad), lambda i: (i, 0))

    flops = 2 * B_pad * (latent_dim * 600 + 600 * 200 + 200 * 100 + 100 * out_pad)
    bytes_accessed = sum(int(a.size) * a.dtype.itemsize for a in operands)
    bytes_accessed += B_pad * out_pad * 4
    transcendentals = B_pad * (3 + out_pad)  # 3 rsqrt + sigmoid per row

    out = pl.pallas_call(
        custom_ae_kernel,
        out_shape=jax.ShapeDtypeStruct((B_pad, out_pad), jnp.float32),
        grid=grid,
        in_specs=in_specs,
        out_specs=out_specs,
        compiler_params=pltpu.CompilerParams(
            dimension_semantics=("parallel",),
            vmem_limit_bytes=16 << 20,
        ),
        cost_estimate=pl.CostEstimate(
            flops=flops,
            transcendentals=transcendentals,
            bytes_accessed=bytes_accessed,
        ),
    )(*operands)
    return out[:B, :target_dim]


def reference_forward(x, params, ln):
    """Pure-JAX reference with PyTorch LayerNorm semantics (two-pass)."""
    B = x.shape[0]
    h = x.reshape(B, -1).astype(jnp.float32)
    (w1, b1), (w2, b2), (w3, b3), (w4, b4) = params
    (g1, be1), (g2, be2), (g3, be3) = ln
    for (w, b), (g, be) in zip([(w1, b1), (w2, b2), (w3, b3)],
                               [(g1, be1), (g2, be2), (g3, be3)]):
        h = h @ w.astype(jnp.float32) + b
        mu = jnp.mean(h, axis=-1, keepdims=True)
        var = jnp.mean((h - mu) ** 2, axis=-1, keepdims=True)
        h = (h - mu) * jax.lax.rsqrt(var + LN_EPS) * g + be
        h = jnp.maximum(h, 0.0)
    h = h @ w4.astype(jnp.float32) + b4
    return jax.nn.sigmoid(h)


if __name__ == "__main__":
    key = jax.random.PRNGKey(0)
    k_x, k_p = jax.random.split(key)

    # Intermediate activation from a split model: NCHW, small shapes.
    B, C, H, W = 2, 4, 16, 16
    latent_dim = C * H * W          # 1024
    target_dim = 64                 # small reconstruction target

    x = jax.random.normal(k_x, (B, C, H, W), jnp.float32)
    params, ln = init_params(k_p, latent_dim, target_dim)

    out = custom_ae_forward(x, params, ln)
    out = jax.block_until_ready(out)

    ref = reference_forward(x, params, ln)
    assert out.shape == (B, target_dim)
    # Tolerance covers single-pass vs two-pass LayerNorm formulation (f32);
    # both paths use the same bf16-rounded weights so matmuls agree closely.
    assert jnp.allclose(out, ref, atol=2e-4, rtol=2e-4), "mismatch vs reference"

    print("KERNEL_OK")
</pallas_src>

<mosaic_0001>
module attributes {stable_mosaic.version = 11 : i64} {
  func.func @custom_ae_kernel(%arg0: i32, %arg1: memref<8x1024xf32, #tpu.memory_space<vmem>>, %arg2: memref<1024x600xbf16, #tpu.memory_space<vmem>>, %arg3: memref<1x600xf32, #tpu.memory_space<vmem>>, %arg4: memref<1x600xf32, #tpu.memory_space<vmem>>, %arg5: memref<1x600xf32, #tpu.memory_space<vmem>>, %arg6: memref<600x200xbf16, #tpu.memory_space<vmem>>, %arg7: memref<1x200xf32, #tpu.memory_space<vmem>>, %arg8: memref<1x200xf32, #tpu.memory_space<vmem>>, %arg9: memref<1x200xf32, #tpu.memory_space<vmem>>, %arg10: memref<200x100xbf16, #tpu.memory_space<vmem>>, %arg11: memref<1x100xf32, #tpu.memory_space<vmem>>, %arg12: memref<1x100xf32, #tpu.memory_space<vmem>>, %arg13: memref<1x100xf32, #tpu.memory_space<vmem>>, %arg14: memref<100x128xbf16, #tpu.memory_space<vmem>>, %arg15: memref<1x128xf32, #tpu.memory_space<vmem>>, %arg16: memref<8x128xf32, #tpu.memory_space<vmem>>) attributes {dimension_semantics = [#tpu.dimension_semantics<parallel>], iteration_bounds = array<i64: 1>, scalar_prefetch = 0 : i64, scratch_operands = 0 : i64, tpu.core_type = #tpu.core_type<tc>, window_params = [{transform_indices = @transform_0, window_bounds = array<i64: 8, 1024>}, {pipeline_mode = #tpu.pipeline_mode<synchronous>, transform_indices = @transform_1, window_bounds = array<i64: 1024, 600>}, {pipeline_mode = #tpu.pipeline_mode<synchronous>, transform_indices = @transform_2, window_bounds = array<i64: 1, 600>}, {pipeline_mode = #tpu.pipeline_mode<synchronous>, transform_indices = @transform_3, window_bounds = array<i64: 1, 600>}, {pipeline_mode = #tpu.pipeline_mode<synchronous>, transform_indices = @transform_4, window_bounds = array<i64: 1, 600>}, {pipeline_mode = #tpu.pipeline_mode<synchronous>, transform_indices = @transform_5, window_bounds = array<i64: 600, 200>}, {pipeline_mode = #tpu.pipeline_mode<synchronous>, transform_indices = @transform_6, window_bounds = array<i64: 1, 200>}, {pipeline_mode = #tpu.pipeline_mode<synchronous>, transform_indices = @transform_7, window_bounds = array<i64: 1, 200>}, {pipeline_mode = #tpu.pipeline_mode<synchronous>, transform_indices = @transform_8, window_bounds = array<i64: 1, 200>}, {pipeline_mode = #tpu.pipeline_mode<synchronous>, transform_indices = @transform_9, window_bounds = array<i64: 200, 100>}, {pipeline_mode = #tpu.pipeline_mode<synchronous>, transform_indices = @transform_10, window_bounds = array<i64: 1, 100>}, {pipeline_mode = #tpu.pipeline_mode<synchronous>, transform_indices = @transform_11, window_bounds = array<i64: 1, 100>}, {pipeline_mode = #tpu.pipeline_mode<synchronous>, transform_indices = @transform_12, window_bounds = array<i64: 1, 100>}, {pipeline_mode = #tpu.pipeline_mode<synchronous>, transform_indices = @transform_13, window_bounds = array<i64: 100, 128>}, {pipeline_mode = #tpu.pipeline_mode<synchronous>, transform_indices = @transform_14, window_bounds = array<i64: 1, 128>}, {transform_indices = @transform_15, window_bounds = array<i64: 8, 128>}]} {
    %c0 = arith.constant 0 : index
    %c0_0 = arith.constant 0 : index
    %0 = vector.load %arg1[%c0, %c0_0] : memref<8x1024xf32, #tpu.memory_space<vmem>>, vector<8x1024xf32>
    %c0_1 = arith.constant 0 : index
    %c0_2 = arith.constant 0 : index
    %1 = vector.load %arg2[%c0_1, %c0_2] : memref<1024x600xbf16, #tpu.memory_space<vmem>>, vector<1024x600xbf16>
    %2 = arith.extf %1 : vector<1024x600xbf16> to vector<1024x600xf32>
    %cst = arith.constant dense<0.000000e+00> : vector<8x600xf32>
    %3 = tpu.matmul %0, %2, %cst {dimension_numbers = #tpu.dot_dimension_numbers<[1], [0], [0], [1], [0, 0, 1, 1], [], []>} : vector<8x1024xf32>, vector<1024x600xf32>, vector<8x600xf32> -> vector<8x600xf32>
    %c0_3 = arith.constant 0 : index
    %c0_4 = arith.constant 0 : index
    %4 = vector.load %arg3[%c0_3, %c0_4] : memref<1x600xf32, #tpu.memory_space<vmem>>, vector<1x600xf32>
    %5 = vector.broadcast %4 : vector<1x600xf32> to vector<8x600xf32>
    %6 = arith.addf %3, %5 : vector<8x600xf32>
    %c0_5 = arith.constant 0 : index
    %c0_6 = arith.constant 0 : index
    %7 = vector.load %arg4[%c0_5, %c0_6] : memref<1x600xf32, #tpu.memory_space<vmem>>, vector<1x600xf32>
    %c0_7 = arith.constant 0 : index
    %c0_8 = arith.constant 0 : index
    %8 = vector.load %arg5[%c0_7, %c0_8] : memref<1x600xf32, #tpu.memory_space<vmem>>, vector<1x600xf32>
    %cst_9 = arith.constant dense<0.000000e+00> : vector<8xf32>
    %9 = vector.multi_reduction <add>, %6, %cst_9 [1] : vector<8x600xf32> to vector<8xf32>
    %10 = vector.shape_cast %9 : vector<8xf32> to vector<8x1xf32>
    %11 = arith.mulf %6, %6 : vector<8x600xf32>
    %cst_10 = arith.constant dense<0.000000e+00> : vector<8xf32>
    %12 = vector.multi_reduction <add>, %11, %cst_10 [1] : vector<8x600xf32> to vector<8xf32>
    %13 = vector.shape_cast %12 : vector<8xf32> to vector<8x1xf32>
    %cst_11 = arith.constant 0.00166666671 : f32
    %14 = vector.broadcast %cst_11 : f32 to vector<8x1xf32>
    %15 = arith.mulf %10, %14 : vector<8x1xf32>
    %cst_12 = arith.constant 0.00166666671 : f32
    %16 = vector.broadcast %cst_12 : f32 to vector<8x1xf32>
    %17 = arith.mulf %13, %16 : vector<8x1xf32>
    %18 = arith.mulf %15, %15 : vector<8x1xf32>
    %19 = arith.subf %17, %18 : vector<8x1xf32>
    %cst_13 = arith.constant 0.000000e+00 : f32
    %20 = vector.broadcast %cst_13 : f32 to vector<8x1xf32>
    %21 = arith.maximumf %19, %20 : vector<8x1xf32>
    %22 = vector.broadcast %15 : vector<8x1xf32> to vector<8x600xf32>
    %23 = arith.subf %6, %22 : vector<8x600xf32>
    %cst_14 = arith.constant 9.99999974E-6 : f32
    %24 = vector.broadcast %cst_14 : f32 to vector<8x1xf32>
    %25 = arith.addf %21, %24 : vector<8x1xf32>
    %26 = math.rsqrt %25 : vector<8x1xf32>
    %27 = vector.broadcast %26 : vector<8x1xf32> to vector<8x600xf32>
    %28 = arith.mulf %23, %27 : vector<8x600xf32>
    %29 = vector.broadcast %7 : vector<1x600xf32> to vector<8x600xf32>
    %30 = arith.mulf %28, %29 : vector<8x600xf32>
    %31 = vector.broadcast %8 : vector<1x600xf32> to vector<8x600xf32>
    %32 = arith.addf %30, %31 : vector<8x600xf32>
    %cst_15 = arith.constant 0.000000e+00 : f32
    %33 = vector.broadcast %cst_15 : f32 to vector<8x600xf32>
    %34 = arith.maximumf %32, %33 : vector<8x600xf32>
    %c0_16 = arith.constant 0 : index
    %c0_17 = arith.constant 0 : index
    %35 = vector.load %arg6[%c0_16, %c0_17] : memref<600x200xbf16, #tpu.memory_space<vmem>>, vector<600x200xbf16>
    %36 = arith.extf %35 : vector<600x200xbf16> to vector<600x200xf32>
    %cst_18 = arith.constant dense<0.000000e+00> : vector<8x200xf32>
    %37 = tpu.matmul %34, %36, %cst_18 {dimension_numbers = #tpu.dot_dimension_numbers<[1], [0], [0], [1], [0, 0, 1, 1], [], []>} : vector<8x600xf32>, vector<600x200xf32>, vector<8x200xf32> -> vector<8x200xf32>
    %c0_19 = arith.constant 0 : index
    %c0_20 = arith.constant 0 : index
    %38 = vector.load %arg7[%c0_19, %c0_20] : memref<1x200xf32, #tpu.memory_space<vmem>>, vector<1x200xf32>
    %39 = vector.broadcast %38 : vector<1x200xf32> to vector<8x200xf32>
    %40 = arith.addf %37, %39 : vector<8x200xf32>
    %c0_21 = arith.constant 0 : index
    %c0_22 = arith.constant 0 : index
    %41 = vector.load %arg8[%c0_21, %c0_22] : memref<1x200xf32, #tpu.memory_space<vmem>>, vector<1x200xf32>
    %c0_23 = arith.constant 0 : index
    %c0_24 = arith.constant 0 : index
    %42 = vector.load %arg9[%c0_23, %c0_24] : memref<1x200xf32, #tpu.memory_space<vmem>>, vector<1x200xf32>
    %cst_25 = arith.constant dense<0.000000e+00> : vector<8xf32>
    %43 = vector.multi_reduction <add>, %40, %cst_25 [1] : vector<8x200xf32> to vector<8xf32>
    %44 = vector.shape_cast %43 : vector<8xf32> to vector<8x1xf32>
    %45 = arith.mulf %40, %40 : vector<8x200xf32>
    %cst_26 = arith.constant dense<0.000000e+00> : vector<8xf32>
    %46 = vector.multi_reduction <add>, %45, %cst_26 [1] : vector<8x200xf32> to vector<8xf32>
    %47 = vector.shape_cast %46 : vector<8xf32> to vector<8x1xf32>
    %cst_27 = arith.constant 5.000000e-03 : f32
    %48 = vector.broadcast %cst_27 : f32 to vector<8x1xf32>
    %49 = arith.mulf %44, %48 : vector<8x1xf32>
    %cst_28 = arith.constant 5.000000e-03 : f32
    %50 = vector.broadcast %cst_28 : f32 to vector<8x1xf32>
    %51 = arith.mulf %47, %50 : vector<8x1xf32>
    %52 = arith.mulf %49, %49 : vector<8x1xf32>
    %53 = arith.subf %51, %52 : vector<8x1xf32>
    %cst_29 = arith.constant 0.000000e+00 : f32
    %54 = vector.broadcast %cst_29 : f32 to vector<8x1xf32>
    %55 = arith.maximumf %53, %54 : vector<8x1xf32>
    %56 = vector.broadcast %49 : vector<8x1xf32> to vector<8x200xf32>
    %57 = arith.subf %40, %56 : vector<8x200xf32>
    %cst_30 = arith.constant 9.99999974E-6 : f32
    %58 = vector.broadcast %cst_30 : f32 to vector<8x1xf32>
    %59 = arith.addf %55, %58 : vector<8x1xf32>
    %60 = math.rsqrt %59 : vector<8x1xf32>
    %61 = vector.broadcast %60 : vector<8x1xf32> to vector<8x200xf32>
    %62 = arith.mulf %57, %61 : vector<8x200xf32>
    %63 = vector.broadcast %41 : vector<1x200xf32> to vector<8x200xf32>
    %64 = arith.mulf %62, %63 : vector<8x200xf32>
    %65 = vector.broadcast %42 : vector<1x200xf32> to vector<8x200xf32>
    %66 = arith.addf %64, %65 : vector<8x200xf32>
    %cst_31 = arith.constant 0.000000e+00 : f32
    %67 = vector.broadcast %cst_31 : f32 to vector<8x200xf32>
    %68 = arith.maximumf %66, %67 : vector<8x200xf32>
    %c0_32 = arith.constant 0 : index
    %c0_33 = arith.constant 0 : index
    %69 = vector.load %arg10[%c0_32, %c0_33] : memref<200x100xbf16, #tpu.memory_space<vmem>>, vector<200x100xbf16>
    %70 = arith.extf %69 : vector<200x100xbf16> to vector<200x100xf32>
    %cst_34 = arith.constant dense<0.000000e+00> : vector<8x100xf32>
    %71 = tpu.matmul %68, %70, %cst_34 {dimension_numbers = #tpu.dot_dimension_numbers<[1], [0], [0], [1], [0, 0, 1, 1], [], []>} : vector<8x200xf32>, vector<200x100xf32>, vector<8x100xf32> -> vector<8x100xf32>
    %c0_35 = arith.constant 0 : index
    %c0_36 = arith.constant 0 : index
    %72 = vector.load %arg11[%c0_35, %c0_36] : memref<1x100xf32, #tpu.memory_space<vmem>>, vector<1x100xf32>
    %73 = vector.broadcast %72 : vector<1x100xf32> to vector<8x100xf32>
    %74 = arith.addf %71, %73 : vector<8x100xf32>
    %c0_37 = arith.constant 0 : index
    %c0_38 = arith.constant 0 : index
    %75 = vector.load %arg12[%c0_37, %c0_38] : memref<1x100xf32, #tpu.memory_space<vmem>>, vector<1x100xf32>
    %c0_39 = arith.constant 0 : index
    %c0_40 = arith.constant 0 : index
    %76 = vector.load %arg13[%c0_39, %c0_40] : memref<1x100xf32, #tpu.memory_space<vmem>>, vector<1x100xf32>
    %cst_41 = arith.constant dense<0.000000e+00> : vector<8xf32>
    %77 = vector.multi_reduction <add>, %74, %cst_41 [1] : vector<8x100xf32> to vector<8xf32>
    %78 = vector.shape_cast %77 : vector<8xf32> to vector<8x1xf32>
    %79 = arith.mulf %74, %74 : vector<8x100xf32>
    %cst_42 = arith.constant dense<0.000000e+00> : vector<8xf32>
    %80 = vector.multi_reduction <add>, %79, %cst_42 [1] : vector<8x100xf32> to vector<8xf32>
    %81 = vector.shape_cast %80 : vector<8xf32> to vector<8x1xf32>
    %cst_43 = arith.constant 0.00999999977 : f32
    %82 = vector.broadcast %cst_43 : f32 to vector<8x1xf32>
    %83 = arith.mulf %78, %82 : vector<8x1xf32>
    %cst_44 = arith.constant 0.00999999977 : f32
    %84 = vector.broadcast %cst_44 : f32 to vector<8x1xf32>
    %85 = arith.mulf %81, %84 : vector<8x1xf32>
    %86 = arith.mulf %83, %83 : vector<8x1xf32>
    %87 = arith.subf %85, %86 : vector<8x1xf32>
    %cst_45 = arith.constant 0.000000e+00 : f32
    %88 = vector.broadcast %cst_45 : f32 to vector<8x1xf32>
    %89 = arith.maximumf %87, %88 : vector<8x1xf32>
    %90 = vector.broadcast %83 : vector<8x1xf32> to vector<8x100xf32>
    %91 = arith.subf %74, %90 : vector<8x100xf32>
    %cst_46 = arith.constant 9.99999974E-6 : f32
    %92 = vector.broadcast %cst_46 : f32 to vector<8x1xf32>
    %93 = arith.addf %89, %92 : vector<8x1xf32>
    %94 = math.rsqrt %93 : vector<8x1xf32>
    %95 = vector.broadcast %94 : vector<8x1xf32> to vector<8x100xf32>
    %96 = arith.mulf %91, %95 : vector<8x100xf32>
    %97 = vector.broadcast %75 : vector<1x100xf32> to vector<8x100xf32>
    %98 = arith.mulf %96, %97 : vector<8x100xf32>
    %99 = vector.broadcast %76 : vector<1x100xf32> to vector<8x100xf32>
    %100 = arith.addf %98, %99 : vector<8x100xf32>
    %cst_47 = arith.constant 0.000000e+00 : f32
    %101 = vector.broadcast %cst_47 : f32 to vector<8x100xf32>
    %102 = arith.maximumf %100, %101 : vector<8x100xf32>
    %c0_48 = arith.constant 0 : index
    %c0_49 = arith.constant 0 : index
    %103 = vector.load %arg14[%c0_48, %c0_49] : memref<100x128xbf16, #tpu.memory_space<vmem>>, vector<100x128xbf16>
    %104 = arith.extf %103 : vector<100x128xbf16> to vector<100x128xf32>
    %cst_50 = arith.constant dense<0.000000e+00> : vector<8x128xf32>
    %105 = tpu.matmul %102, %104, %cst_50 {dimension_numbers = #tpu.dot_dimension_numbers<[1], [0], [0], [1], [0, 0, 1, 1], [], []>} : vector<8x100xf32>, vector<100x128xf32>, vector<8x128xf32> -> vector<8x128xf32>
    %c0_51 = arith.constant 0 : index
    %c0_52 = arith.constant 0 : index
    %106 = vector.load %arg15[%c0_51, %c0_52] : memref<1x128xf32, #tpu.memory_space<vmem>>, vector<1x128xf32>
    %107 = vector.broadcast %106 : vector<1x128xf32> to vector<8x128xf32>
    %108 = arith.addf %105, %107 : vector<8x128xf32>
    %109 = arith.negf %108 : vector<8x128xf32>
    %110 = math.exp %109 : vector<8x128xf32>
    %cst_53 = arith.constant 1.000000e+00 : f32
    %111 = vector.broadcast %cst_53 : f32 to vector<8x128xf32>
    %112 = arith.addf %111, %110 : vector<8x128xf32>
    %113 = arith.divf %111, %112 : vector<8x128xf32>
    %c0_54 = arith.constant 0 : index
    %c0_55 = arith.constant 0 : index
    %114 = vector.load %arg16[%c0_54, %c0_55] : memref<8x128xf32, #tpu.memory_space<vmem>>, vector<8x128xf32>
    tpu.vector_store %arg16[%c0_54, %c0_55], %113 {strides = array<i32>} : memref<8x128xf32, #tpu.memory_space<vmem>>, vector<8x128xf32>,
    return
  }
  func.func @transform_0(%arg0: i32) -> (i32, i32) {
    %c0_i32 = arith.constant 0 : i32
    %c0_i32_0 = arith.constant 0 : i32
    return %arg0, %c0_i32 : i32, i32
  }
  func.func @transform_1(%arg0: i32) -> (i32, i32) {
    %c0_i32 = arith.constant 0 : i32
    %c0_i32_0 = arith.constant 0 : i32
    %c0_i32_1 = arith.constant 0 : i32
    return %c0_i32, %c0_i32_0 : i32, i32
  }
  func.func @transform_2(%arg0: i32) -> (i32, i32) {
    %c0_i32 = arith.constant 0 : i32
    %c0_i32_0 = arith.constant 0 : i32
    %c0_i32_1 = arith.constant 0 : i32
    return %c0_i32, %c0_i32_0 : i32, i32
  }
  func.func @transform_3(%arg0: i32) -> (i32, i32) {
    %c0_i32 = arith.constant 0 : i32
    %c0_i32_0 = arith.constant 0 : i32
    %c0_i32_1 = arith.constant 0 : i32
    return %c0_i32, %c0_i32_0 : i32, i32
  }
  func.func @transform_4(%arg0: i32) -> (i32, i32) {
    %c0_i32 = arith.constant 0 : i32
    %c0_i32_0 = arith.constant 0 : i32
    %c0_i32_1 = arith.constant 0 : i32
    return %c0_i32, %c0_i32_0 : i32, i32
  }
  func.func @transform_5(%arg0: i32) -> (i32, i32) {
    %c0_i32 = arith.constant 0 : i32
    %c0_i32_0 = arith.constant 0 : i32
    %c0_i32_1 = arith.constant 0 : i32
    return %c0_i32, %c0_i32_0 : i32, i32
  }
  func.func @transform_6(%arg0: i32) -> (i32, i32) {
    %c0_i32 = arith.constant 0 : i32
    %c0_i32_0 = arith.constant 0 : i32
    %c0_i32_1 = arith.constant 0 : i32
    return %c0_i32, %c0_i32_0 : i32, i32
  }
  func.func @transform_7(%arg0: i32) -> (i32, i32) {
    %c0_i32 = arith.constant 0 : i32
    %c0_i32_0 = arith.constant 0 : i32
    %c0_i32_1 = arith.constant 0 : i32
    return %c0_i32, %c0_i32_0 : i32, i32
  }
  func.func @transform_8(%arg0: i32) -> (i32, i32) {
    %c0_i32 = arith.constant 0 : i32
    %c0_i32_0 = arith.constant 0 : i32
    %c0_i32_1 = arith.constant 0 : i32
    return %c0_i32, %c0_i32_0 : i32, i32
  }
  func.func @transform_9(%arg0: i32) -> (i32, i32) {
    %c0_i32 = arith.constant 0 : i32
    %c0_i32_0 = arith.constant 0 : i32
    %c0_i32_1 = arith.constant 0 : i32
    return %c0_i32, %c0_i32_0 : i32, i32
  }
  func.func @transform_10(%arg0: i32) -> (i32, i32) {
    %c0_i32 = arith.constant 0 : i32
    %c0_i32_0 = arith.constant 0 : i32
    %c0_i32_1 = arith.constant 0 : i32
    return %c0_i32, %c0_i32_0 : i32, i32
  }
  func.func @transform_11(%arg0: i32) -> (i32, i32) {
    %c0_i32 = arith.constant 0 : i32
    %c0_i32_0 = arith.constant 0 : i32
    %c0_i32_1 = arith.constant 0 : i32
    return %c0_i32, %c0_i32_0 : i32, i32
  }
  func.func @transform_12(%arg0: i32) -> (i32, i32) {
    %c0_i32 = arith.constant 0 : i32
    %c0_i32_0 = arith.constant 0 : i32
    %c0_i32_1 = arith.constant 0 : i32
    return %c0_i32, %c0_i32_0 : i32, i32
  }
  func.func @transform_13(%arg0: i32) -> (i32, i32) {
    %c0_i32 = arith.constant 0 : i32
    %c0_i32_0 = arith.constant 0 : i32
    %c0_i32_1 = arith.constant 0 : i32
    return %c0_i32, %c0_i32_0 : i32, i32
  }
  func.func @transform_14(%arg0: i32) -> (i32, i32) {
    %c0_i32 = arith.constant 0 : i32
    %c0_i32_0 = arith.constant 0 : i32
    %c0_i32_1 = arith.constant 0 : i32
    return %c0_i32, %c0_i32_0 : i32, i32
  }
  func.func @transform_15(%arg0: i32) -> (i32, i32) {
    %c0_i32 = arith.constant 0 : i32
    %c0_i32_0 = arith.constant 0 : i32
    return %arg0, %c0_i32 : i32, i32
  }
}

</mosaic_0001>

<llo_original>
// kernel: tpu_custom_call.1
$region0: #{tpu_custom_call.1}
  #allocation0 [shape = 'u32[]', space=smem, size = 0x4, offset = 0x4, fixed_abs, tag = 'smem constant byte address 0x4 - core index']
  #allocation1 [shape = 'u32[72,128]{1,0:T(1,128)}', space=vmem, size = 0x9000, scoped, tag = 'internal scratch']
  %s0 = inlined_call_operand.vmem [shape: f32[8,1024], index: 0, kind: input, shape index: {}]
  %s1 = inlined_call_operand.vmem [shape: bf16[1024,600], index: 1, kind: input, shape index: {}]
  %s2 = inlined_call_operand.vmem [shape: f32[1,600], index: 2, kind: input, shape index: {}]
  %s3 = inlined_call_operand.vmem [shape: f32[1,600], index: 3, kind: input, shape index: {}]
  %s4 = inlined_call_operand.vmem [shape: f32[1,600], index: 4, kind: input, shape index: {}]
  %s5 = inlined_call_operand.vmem [shape: bf16[600,200], index: 5, kind: input, shape index: {}]
  %s6 = inlined_call_operand.vmem [shape: f32[1,200], index: 6, kind: input, shape index: {}]
  %s7 = inlined_call_operand.vmem [shape: f32[1,200], index: 7, kind: input, shape index: {}]
  %s8 = inlined_call_operand.vmem [shape: f32[1,200], index: 8, kind: input, shape index: {}]
  %s9 = inlined_call_operand.vmem [shape: bf16[200,100], index: 9, kind: input, shape index: {}]
  %s10 = inlined_call_operand.vmem [shape: f32[1,100], index: 10, kind: input, shape index: {}]
  %s11 = inlined_call_operand.vmem [shape: f32[1,100], index: 11, kind: input, shape index: {}]
  %s12 = inlined_call_operand.vmem [shape: f32[1,100], index: 12, kind: input, shape index: {}]
  %s13 = inlined_call_operand.vmem [shape: bf16[100,128], index: 13, kind: input, shape index: {}]
  %s14 = inlined_call_operand.vmem [shape: f32[1,128], index: 14, kind: input, shape index: {}]
  %s15 = inlined_call_operand.hbm [shape: f32[8,128], index: 15, kind: output, shape index: {}]
  %s16 = sld [smem:[#allocation0]]
  $region70: #{tpu_custom_call.1} parent=0
    _
  %s18 = ssub.s32 1, %s16
  %s19 = scalar_select 0, %s18, %s16
  $region1: #{tpu_custom_call.1} parent=0
    #allocation2 [shape = 'u8[4096]{0}', space=vmem, size = 0x1000, scoped, tag = 'output window, operand 0, single buffered']
    #allocation3 [shape = 's32[1]{0}', space=sflag, size = 0x4, scoped, tag = 'scoped memory for tpu_custom_call.1']
    %20 = vsyncpa [#allocation3], 0
    // Predicated region
    $region2: #{tpu_custom_call.1} parent=1 // pred_check
      _
    $region3: #{tpu_custom_call.1} parent=1 // pred_check_branch
      %22 = sbr.rel (0) target = $region5
    $region4: #{tpu_custom_call.1} parent=1 // pred_region
      _
    $region5: #{tpu_custom_call.1} parent=1 // pred_fallthru
      _
    // Predicated region
    $region6: #{tpu_custom_call.1} parent=1 // pred_check
      _
    $region7: #{tpu_custom_call.1} parent=1 // pred_check_branch
      %24 = sbr.rel (0) target = $region9
    $region8: #{tpu_custom_call.1} parent=1 // pred_region
      _
    $region9: #{tpu_custom_call.1} parent=1 // pred_fallthru
      _
    // Predicated region
    $region10: #{tpu_custom_call.1} parent=1 // pred_check
      _
    $region11: #{tpu_custom_call.1} parent=1 // pred_check_branch
      %26 = sbr.rel (0) target = $region13
    $region12: #{tpu_custom_call.1} parent=1 // pred_region
      _
    $region13: #{tpu_custom_call.1} parent=1 // pred_fallthru
      _
    // Predicated region
    $region14: #{tpu_custom_call.1} parent=1 // pred_check
      _
    $region15: #{tpu_custom_call.1} parent=1 // pred_check_branch
      %28 = sbr.rel (0) target = $region17
    $region16: #{tpu_custom_call.1} parent=1 // pred_region
      _
    $region17: #{tpu_custom_call.1} parent=1 // pred_fallthru
      _
    // Predicated region
    $region18: #{tpu_custom_call.1} parent=1 // pred_check
      _
    $region19: #{tpu_custom_call.1} parent=1 // pred_check_branch
      %30 = sbr.rel (0) target = $region21
    $region20: #{tpu_custom_call.1} parent=1 // pred_region
      _
    $region21: #{tpu_custom_call.1} parent=1 // pred_fallthru
      _
    // Predicated region
    $region22: #{tpu_custom_call.1} parent=1 // pred_check
      _
    $region23: #{tpu_custom_call.1} parent=1 // pred_check_branch
      %32 = sbr.rel (0) target = $region25
    $region24: #{tpu_custom_call.1} parent=1 // pred_region
      _
    $region25: #{tpu_custom_call.1} parent=1 // pred_fallthru
      _
    // Predicated region
    $region26: #{tpu_custom_call.1} parent=1 // pred_check
      _
    $region27: #{tpu_custom_call.1} parent=1 // pred_check_branch
      %34 = sbr.rel (0) target = $region29
    $region28: #{tpu_custom_call.1} parent=1 // pred_region
      _
    $region29: #{tpu_custom_call.1} parent=1 // pred_fallthru
      _
    // Predicated region
    $region30: #{tpu_custom_call.1} parent=1 // pred_check
      _
    $region31: #{tpu_custom_call.1} parent=1 // pred_check_branch
      %36 = sbr.rel (0) target = $region33
    $region32: #{tpu_custom_call.1} parent=1 // pred_region
      _
    $region33: #{tpu_custom_call.1} parent=1 // pred_fallthru
      _
    // Predicated region
    $region34: #{tpu_custom_call.1} parent=1 // pred_check
      _
    $region35: #{tpu_custom_call.1} parent=1 // pred_check_branch
      %38 = sbr.rel (0) target = $region37
    $region36: #{tpu_custom_call.1} parent=1 // pred_region
      _
    $region37: #{tpu_custom_call.1} parent=1 // pred_fallthru
      _
    // Predicated region
    $region38: #{tpu_custom_call.1} parent=1 // pred_check
      _
    $region39: #{tpu_custom_call.1} parent=1 // pred_check_branch
      %40 = sbr.rel (0) target = $region41
    $region40: #{tpu_custom_call.1} parent=1 // pred_region
      _
    $region41: #{tpu_custom_call.1} parent=1 // pred_fallthru
      _
    // Predicated region
    $region42: #{tpu_custom_call.1} parent=1 // pred_check
      _
    $region43: #{tpu_custom_call.1} parent=1 // pred_check_branch
      %42 = sbr.rel (0) target = $region45
    $region44: #{tpu_custom_call.1} parent=1 // pred_region
      _
    $region45: #{tpu_custom_call.1} parent=1 // pred_fallthru
      _
    // Predicated region
    $region46: #{tpu_custom_call.1} parent=1 // pred_check
      _
    $region47: #{tpu_custom_call.1} parent=1 // pred_check_branch
      %44 = sbr.rel (0) target = $region49
    $region48: #{tpu_custom_call.1} parent=1 // pred_region
      _
    $region49: #{tpu_custom_call.1} parent=1 // pred_fallthru
      _
    // Predicated region
    $region50: #{tpu_custom_call.1} parent=1 // pred_check
      _
    $region51: #{tpu_custom_call.1} parent=1 // pred_check_branch
      %46 = sbr.rel (0) target = $region53
    $region52: #{tpu_custom_call.1} parent=1 // pred_region
      _
    $region53: #{tpu_custom_call.1} parent=1 // pred_fallthru
      _
    // Predicated region
    $region54: #{tpu_custom_call.1} parent=1 // pred_check
      _
    $region55: #{tpu_custom_call.1} parent=1 // pred_check_branch
      %48 = sbr.rel (0) target = $region57
    $region56: #{tpu_custom_call.1} parent=1 // pred_region
      _
    $region57: #{tpu_custom_call.1} parent=1 // pred_fallthru
      _
    // Predicated region
    $region58: #{tpu_custom_call.1} parent=1 // pred_check
      _
    $region59: #{tpu_custom_call.1} parent=1 // pred_check_branch
      %50 = sbr.rel (0) target = $region61
    $region60: #{tpu_custom_call.1} parent=1 // pred_region
      _
    $region61: #{tpu_custom_call.1} parent=1 // pred_fallthru
      _
    %v51 = vld [vmem:[%s0] sm:$0xff]
    %v52 = vld [vmem:[%s0 + $0x8] sm:$0xff]
    %v53 = vld [vmem:[%s0 + $0x10] sm:$0xff]
    %v54 = vld [vmem:[%s0 + $0x18] sm:$0xff]
    %v55 = vld [vmem:[%s0 + $0x20] sm:$0xff]
    %v56 = vld [vmem:[%s0 + $0x28] sm:$0xff]
    %v57 = vld [vmem:[%s0 + $0x30] sm:$0xff]
    %v58 = vld [vmem:[%s0 + $0x38] sm:$0xff]
    %v59 = vld [vmem:[%s1] sm:$0xff]
    %v60 = vld [vmem:[%s1 + $0x8] sm:$0xff]
    %v61 = vld [vmem:[%s1 + $0x10] sm:$0xf]
    %v62 = vld [vmem:[%s1 + $0x14] sm:$0xff]
    %v63 = vld [vmem:[%s1 + $0x1c] sm:$0xff]
    %v64 = vld [vmem:[%s1 + $0x24] sm:$0xf]
    %v65 = vld [vmem:[%s1 + $0x28] sm:$0xff]
    %v66 = vld [vmem:[%s1 + $0x30] sm:$0xff]
    %v67 = vld [vmem:[%s1 + $0x38] sm:$0xf]
    %v68 = vld [vmem:[%s1 + $0x3c] sm:$0xff]
    %v69 = vld [vmem:[%s1 + $0x44] sm:$0xff]
    %v70 = vld [vmem:[%s1 + $0x4c] sm:$0xf]
    %v71 = vld [vmem:[%s1 + $0x50] sm:$0xff]
    %v72 = vld [vmem:[%s1 + $0x58] sm:$0xff]
    %v73 = vld [vmem:[%s1 + $0x60] sm:$0xf]
    %v74 = vld [vmem:[%s1 + $0x64] sm:$0xff]
    %v75 = vld [vmem:[%s1 + $0x6c] sm:$0xff]
    %v76 = vld [vmem:[%s1 + $0x74] sm:$0xf]
    %v77 = vld [vmem:[%s1 + $0x78] sm:$0xff]
    %v78 = vld [vmem:[%s1 + $0x80] sm:$0xff]
    %v79 = vld [vmem:[%s1 + $0x88] sm:$0xf]
    %v80 = vld [vmem:[%s1 + $0x8c] sm:$0xff]
    %v81 = vld [vmem:[%s1 + $0x94] sm:$0xff]
    %v82 = vld [vmem:[%s1 + $0x9c] sm:$0xf]
    %v83 = vld [vmem:[%s1 + $0xa0] sm:$0xff]
    %v84 = vld [vmem:[%s1 + $0xa8] sm:$0xff]
    %v85 = vld [vmem:[%s1 + $0xb0] sm:$0xf]
    %v86 = vld [vmem:[%s1 + $0xb4] sm:$0xff]
    %v87 = vld [vmem:[%s1 + $0xbc] sm:$0xff]
    %v88 = vld [vmem:[%s1 + $0xc4] sm:$0xf]
    %v89 = vld [vmem:[%s1 + $0xc8] sm:$0xff]
    %v90 = vld [vmem:[%s1 + $0xd0] sm:$0xff]
    %v91 = vld [vmem:[%s1 + $0xd8] sm:$0xf]
    %v92 = vld [vmem:[%s1 + $0xdc] sm:$0xff]
    %v93 = vld [vmem:[%s1 + $0xe4] sm:$0xff]
    %v94 = vld [vmem:[%s1 + $0xec] sm:$0xf]
    %v95 = vld [vmem:[%s1 + $0xf0] sm:$0xff]
    %v96 = vld [vmem:[%s1 + $0xf8] sm:$0xff]
    %v97 = vld [vmem:[%s1 + $0x100] sm:$0xf]
    %v98 = vld [vmem:[%s1 + $0x104] sm:$0xff]
    %v99 = vld [vmem:[%s1 + $0x10c] sm:$0xff]
    %v100 = vld [vmem:[%s1 + $0x114] sm:$0xf]
    %v101 = vld [vmem:[%s1 + $0x118] sm:$0xff]
    %v102 = vld [vmem:[%s1 + $0x120] sm:$0xff]
    %v103 = vld [vmem:[%s1 + $0x128] sm:$0xf]
    %v104 = vld [vmem:[%s1 + $0x12c] sm:$0xff]
    %v105 = vld [vmem:[%s1 + $0x134] sm:$0xff]
    %v106 = vld [vmem:[%s1 + $0x13c] sm:$0xf]
    %v107 = vld [vmem:[%s1 + $0x140] sm:$0xff]
    %v108 = vld [vmem:[%s1 + $0x148] sm:$0xff]
    %v109 = vld [vmem:[%s1 + $0x150] sm:$0xf]
    %v110 = vld [vmem:[%s1 + $0x154] sm:$0xff]
    %v111 = vld [vmem:[%s1 + $0x15c] sm:$0xff]
    %v112 = vld [vmem:[%s1 + $0x164] sm:$0xf]
    %v113 = vld [vmem:[%s1 + $0x168] sm:$0xff]
    %v114 = vld [vmem:[%s1 + $0x170] sm:$0xff]
    %v115 = vld [vmem:[%s1 + $0x178] sm:$0xf]
    %v116 = vld [vmem:[%s1 + $0x17c] sm:$0xff]
    %v117 = vld [vmem:[%s1 + $0x184] sm:$0xff]
    %v118 = vld [vmem:[%s1 + $0x18c] sm:$0xf]
    %v119 = vld [vmem:[%s1 + $0x190] sm:$0xff]
    %v120 = vld [vmem:[%s1 + $0x198] sm:$0xff]
    %v121 = vld [vmem:[%s1 + $0x1a0] sm:$0xf]
    %v122 = vld [vmem:[%s1 + $0x1a4] sm:$0xff]
    %v123 = vld [vmem:[%s1 + $0x1ac] sm:$0xff]
    %v124 = vld [vmem:[%s1 + $0x1b4] sm:$0xf]
    %v125 = vld [vmem:[%s1 + $0x1b8] sm:$0xff]
    %v126 = vld [vmem:[%s1 + $0x1c0] sm:$0xff]
    %v127 = vld [vmem:[%s1 + $0x1c8] sm:$0xf]
    %v128 = vld [vmem:[%s1 + $0x1cc] sm:$0xff]
    %v129 = vld [vmem:[%s1 + $0x1d4] sm:$0xff]
    %v130 = vld [vmem:[%s1 + $0x1dc] sm:$0xf]
    %v131 = vld [vmem:[%s1 + $0x1e0] sm:$0xff]
    %v132 = vld [vmem:[%s1 + $0x1e8] sm:$0xff]
    %v133 = vld [vmem:[%s1 + $0x1f0] sm:$0xf]
    %v134 = vld [vmem:[%s1 + $0x1f4] sm:$0xff]
    %v135 = vld [vmem:[%s1 + $0x1fc] sm:$0xff]
    %v136 = vld [vmem:[%s1 + $0x204] sm:$0xf]
    %v137 = vld [vmem:[%s1 + $0x208] sm:$0xff]
    %v138 = vld [vmem:[%s1 + $0x210] sm:$0xff]
    %v139 = vld [vmem:[%s1 + $0x218] sm:$0xf]
    %v140 = vld [vmem:[%s1 + $0x21c] sm:$0xff]
    %v141 = vld [vmem:[%s1 + $0x224] sm:$0xff]
    %v142 = vld [vmem:[%s1 + $0x22c] sm:$0xf]
    %v143 = vld [vmem:[%s1 + $0x230] sm:$0xff]
    %v144 = vld [vmem:[%s1 + $0x238] sm:$0xff]
    %v145 = vld [vmem:[%s1 + $0x240] sm:$0xf]
    %v146 = vld [vmem:[%s1 + $0x244] sm:$0xff]
    %v147 = vld [vmem:[%s1 + $0x24c] sm:$0xff]
    %v148 = vld [vmem:[%s1 + $0x254] sm:$0xf]
    %v149 = vld [vmem:[%s1 + $0x258] sm:$0xff]
    %v150 = vld [vmem:[%s1 + $0x260] sm:$0xff]
    %v151 = vld [vmem:[%s1 + $0x268] sm:$0xf]
    %v152 = vld [vmem:[%s1 + $0x26c] sm:$0xff]
    %v153 = vld [vmem:[%s1 + $0x274] sm:$0xff]
    %v154 = vld [vmem:[%s1 + $0x27c] sm:$0xf]
    %v155 = vld [vmem:[%s1 + $0x280] sm:$0xff]
    %v156 = vld [vmem:[%s1 + $0x288] sm:$0xff]
    %v157 = vld [vmem:[%s1 + $0x290] sm:$0xf]
    %v158 = vld [vmem:[%s1 + $0x294] sm:$0xff]
    %v159 = vld [vmem:[%s1 + $0x29c] sm:$0xff]
    %v160 = vld [vmem:[%s1 + $0x2a4] sm:$0xf]
    %v161 = vld [vmem:[%s1 + $0x2a8] sm:$0xff]
    %v162 = vld [vmem:[%s1 + $0x2b0] sm:$0xff]
    %v163 = vld [vmem:[%s1 + $0x2b8] sm:$0xf]
    %v164 = vld [vmem:[%s1 + $0x2bc] sm:$0xff]
    %v165 = vld [vmem:[%s1 + $0x2c4] sm:$0xff]
    %v166 = vld [vmem:[%s1 + $0x2cc] sm:$0xf]
    %v167 = vld [vmem:[%s1 + $0x2d0] sm:$0xff]
    %v168 = vld [vmem:[%s1 + $0x2d8] sm:$0xff]
    %v169 = vld [vmem:[%s1 + $0x2e0] sm:$0xf]
    %v170 = vld [vmem:[%s1 + $0x2e4] sm:$0xff]
    %v171 = vld [vmem:[%s1 + $0x2ec] sm:$0xff]
    %v172 = vld [vmem:[%s1 + $0x2f4] sm:$0xf]
    %v173 = vld [vmem:[%s1 + $0x2f8] sm:$0xff]
    %v174 = vld [vmem:[%s1 + $0x300] sm:$0xff]
    %v175 = vld [vmem:[%s1 + $0x308] sm:$0xf]
    %v176 = vld [vmem:[%s1 + $0x30c] sm:$0xff]
    %v177 = vld [vmem:[%s1 + $0x314] sm:$0xff]
    %v178 = vld [vmem:[%s1 + $0x31c] sm:$0xf]
    %v179 = vld [vmem:[%s1 + $0x320] sm:$0xff]
    %v180 = vld [vmem:[%s1 + $0x328] sm:$0xff]
    %v181 = vld [vmem:[%s1 + $0x330] sm:$0xf]
    %v182 = vld [vmem:[%s1 + $0x334] sm:$0xff]
    %v183 = vld [vmem:[%s1 + $0x33c] sm:$0xff]
    %v184 = vld [vmem:[%s1 + $0x344] sm:$0xf]
    %v185 = vld [vmem:[%s1 + $0x348] sm:$0xff]
    %v186 = vld [vmem:[%s1 + $0x350] sm:$0xff]
    %v187 = vld [vmem:[%s1 + $0x358] sm:$0xf]
    %v188 = vld [vmem:[%s1 + $0x35c] sm:$0xff]
    %v189 = vld [vmem:[%s1 + $0x364] sm:$0xff]
    %v190 = vld [vmem:[%s1 + $0x36c] sm:$0xf]
    %v191 = vld [vmem:[%s1 + $0x370] sm:$0xff]
    %v192 = vld [vmem:[%s1 + $0x378] sm:$0xff]
    %v193 = vld [vmem:[%s1 + $0x380] sm:$0xf]
    %v194 = vld [vmem:[%s1 + $0x384] sm:$0xff]
    %v195 = vld [vmem:[%s1 + $0x38c] sm:$0xff]
    %v196 = vld [vmem:[%s1 + $0x394] sm:$0xf]
    %v197 = vld [vmem:[%s1 + $0x398] sm:$0xff]
    %v198 = vld [vmem:[%s1 + $0x3a0] sm:$0xff]
    %v199 = vld [vmem:[%s1 + $0x3a8] sm:$0xf]
    %v200 = vld [vmem:[%s1 + $0x3ac] sm:$0xff]
    %v201 = vld [vmem:[%s1 + $0x3b4] sm:$0xff]
    %v202 = vld [vmem:[%s1 + $0x3bc] sm:$0xf]
    %v203 = vld [vmem:[%s1 + $0x3c0] sm:$0xff]
    %v204 = vld [vmem:[%s1 + $0x3c8] sm:$0xff]
    %v205 = vld [vmem:[%s1 + $0x3d0] sm:$0xf]
    %v206 = vld [vmem:[%s1 + $0x3d4] sm:$0xff]
    %v207 = vld [vmem:[%s1 + $0x3dc] sm:$0xff]
    %v208 = vld [vmem:[%s1 + $0x3e4] sm:$0xf]
    %v209 = vld [vmem:[%s1 + $0x3e8] sm:$0xff]
    %v210 = vld [vmem:[%s1 + $0x3f0] sm:$0xff]
    %v211 = vld [vmem:[%s1 + $0x3f8] sm:$0xf]
    %v212 = vld [vmem:[%s1 + $0x3fc] sm:$0xff]
    %v213 = vld [vmem:[%s1 + $0x404] sm:$0xff]
    %v214 = vld [vmem:[%s1 + $0x40c] sm:$0xf]
    %v215 = vld [vmem:[%s1 + $0x410] sm:$0xff]
    %v216 = vld [vmem:[%s1 + $0x418] sm:$0xff]
    %v217 = vld [vmem:[%s1 + $0x420] sm:$0xf]
    %v218 = vld [vmem:[%s1 + $0x424] sm:$0xff]
    %v219 = vld [vmem:[%s1 + $0x42c] sm:$0xff]
    %v220 = vld [vmem:[%s1 + $0x434] sm:$0xf]
    %v221 = vld [vmem:[%s1 + $0x438] sm:$0xff]
    %v222 = vld [vmem:[%s1 + $0x440] sm:$0xff]
    %v223 = vld [vmem:[%s1 + $0x448] sm:$0xf]
    %v224 = vld [vmem:[%s1 + $0x44c] sm:$0xff]
    %v225 = vld [vmem:[%s1 + $0x454] sm:$0xff]
    %v226 = vld [vmem:[%s1 + $0x45c] sm:$0xf]
    %v227 = vld [vmem:[%s1 + $0x460] sm:$0xff]
    %v228 = vld [vmem:[%s1 + $0x468] sm:$0xff]
    %v229 = vld [vmem:[%s1 + $0x470] sm:$0xf]
    %v230 = vld [vmem:[%s1 + $0x474] sm:$0xff]
    %v231 = vld [vmem:[%s1 + $0x47c] sm:$0xff]
    %v232 = vld [vmem:[%s1 + $0x484] sm:$0xf]
    %v233 = vld [vmem:[%s1 + $0x488] sm:$0xff]
    %v234 = vld [vmem:[%s1 + $0x490] sm:$0xff]
    %v235 = vld [vmem:[%s1 + $0x498] sm:$0xf]
    %v236 = vld [vmem:[%s1 + $0x49c] sm:$0xff]
    %v237 = vld [vmem:[%s1 + $0x4a4] sm:$0xff]
    %v238 = vld [vmem:[%s1 + $0x4ac] sm:$0xf]
    %v239 = vld [vmem:[%s1 + $0x4b0] sm:$0xff]
    %v240 = vld [vmem:[%s1 + $0x4b8] sm:$0xff]
    %v241 = vld [vmem:[%s1 + $0x4c0] sm:$0xf]
    %v242 = vld [vmem:[%s1 + $0x4c4] sm:$0xff]
    %v243 = vld [vmem:[%s1 + $0x4cc] sm:$0xff]
    %v244 = vld [vmem:[%s1 + $0x4d4] sm:$0xf]
    %v245 = vld [vmem:[%s1 + $0x4d8] sm:$0xff]
    %v246 = vld [vmem:[%s1 + $0x4e0] sm:$0xff]
    %v247 = vld [vmem:[%s1 + $0x4e8] sm:$0xf]
    %v248 = vld [vmem:[%s1 + $0x4ec] sm:$0xff]
    %v249 = vld [vmem:[%s1 + $0x4f4] sm:$0xff]
    %v250 = vld [vmem:[%s1 + $0x4fc] sm:$0xf]
    %v251 = vld [vmem:[%s1 + $0x500] sm:$0xff]
    %v252 = vld [vmem:[%s1 + $0x508] sm:$0xff]
    %v253 = vld [vmem:[%s1 + $0x510] sm:$0xf]
    %v254 = vld [vmem:[%s1 + $0x514] sm:$0xff]
    %v255 = vld [vmem:[%s1 + $0x51c] sm:$0xff]
    %v256 = vld [vmem:[%s1 + $0x524] sm:$0xf]
    %v257 = vld [vmem:[%s1 + $0x528] sm:$0xff]
    %v258 = vld [vmem:[%s1 + $0x530] sm:$0xff]
    %v259 = vld [vmem:[%s1 + $0x538] sm:$0xf]
    %v260 = vld [vmem:[%s1 + $0x53c] sm:$0xff]
    %v261 = vld [vmem:[%s1 + $0x544] sm:$0xff]
    %v262 = vld [vmem:[%s1 + $0x54c] sm:$0xf]
    %v263 = vld [vmem:[%s1 + $0x550] sm:$0xff]
    %v264 = vld [vmem:[%s1 + $0x558] sm:$0xff]
    %v265 = vld [vmem:[%s1 + $0x560] sm:$0xf]
    %v266 = vld [vmem:[%s1 + $0x564] sm:$0xff]
    %v267 = vld [vmem:[%s1 + $0x56c] sm:$0xff]
    %v268 = vld [vmem:[%s1 + $0x574] sm:$0xf]
    %v269 = vld [vmem:[%s1 + $0x578] sm:$0xff]
    %v270 = vld [vmem:[%s1 + $0x580] sm:$0xff]
    %v271 = vld [vmem:[%s1 + $0x588] sm:$0xf]
    %v272 = vld [vmem:[%s1 + $0x58c] sm:$0xff]
    %v273 = vld [vmem:[%s1 + $0x594] sm:$0xff]
    %v274 = vld [vmem:[%s1 + $0x59c] sm:$0xf]
    %v275 = vld [vmem:[%s1 + $0x5a0] sm:$0xff]
    %v276 = vld [vmem:[%s1 + $0x5a8] sm:$0xff]
    %v277 = vld [vmem:[%s1 + $0x5b0] sm:$0xf]
    %v278 = vld [vmem:[%s1 + $0x5b4] sm:$0xff]
    %v279 = vld [vmem:[%s1 + $0x5bc] sm:$0xff]
    %v280 = vld [vmem:[%s1 + $0x5c4] sm:$0xf]
    %v281 = vld [vmem:[%s1 + $0x5c8] sm:$0xff]
    %v282 = vld [vmem:[%s1 + $0x5d0] sm:$0xff]
    %v283 = vld [vmem:[%s1 + $0x5d8] sm:$0xf]
    %v284 = vld [vmem:[%s1 + $0x5dc] sm:$0xff]
    %v285 = vld [vmem:[%s1 + $0x5e4] sm:$0xff]
    %v286 = vld [vmem:[%s1 + $0x5ec] sm:$0xf]
    %v287 = vld [vmem:[%s1 + $0x5f0] sm:$0xff]
    %v288 = vld [vmem:[%s1 + $0x5f8] sm:$0xff]
    %v289 = vld [vmem:[%s1 + $0x600] sm:$0xf]
    %v290 = vld [vmem:[%s1 + $0x604] sm:$0xff]
    %v291 = vld [vmem:[%s1 + $0x60c] sm:$0xff]
    %v292 = vld [vmem:[%s1 + $0x614] sm:$0xf]
    %v293 = vld [vmem:[%s1 + $0x618] sm:$0xff]
    %v294 = vld [vmem:[%s1 + $0x620] sm:$0xff]
    %v295 = vld [vmem:[%s1 + $0x628] sm:$0xf]
    %v296 = vld [vmem:[%s1 + $0x62c] sm:$0xff]
    %v297 = vld [vmem:[%s1 + $0x634] sm:$0xff]
    %v298 = vld [vmem:[%s1 + $0x63c] sm:$0xf]
    %v299 = vld [vmem:[%s1 + $0x640] sm:$0xff]
    %v300 = vld [vmem:[%s1 + $0x648] sm:$0xff]
    %v301 = vld [vmem:[%s1 + $0x650] sm:$0xf]
    %v302 = vld [vmem:[%s1 + $0x654] sm:$0xff]
    %v303 = vld [vmem:[%s1 + $0x65c] sm:$0xff]
    %v304 = vld [vmem:[%s1 + $0x664] sm:$0xf]
    %v305 = vld [vmem:[%s1 + $0x668] sm:$0xff]
    %v306 = vld [vmem:[%s1 + $0x670] sm:$0xff]
    %v307 = vld [vmem:[%s1 + $0x678] sm:$0xf]
    %v308 = vld [vmem:[%s1 + $0x67c] sm:$0xff]
    %v309 = vld [vmem:[%s1 + $0x684] sm:$0xff]
    %v310 = vld [vmem:[%s1 + $0x68c] sm:$0xf]
    %v311 = vld [vmem:[%s1 + $0x690] sm:$0xff]
    %v312 = vld [vmem:[%s1 + $0x698] sm:$0xff]
    %v313 = vld [vmem:[%s1 + $0x6a0] sm:$0xf]
    %v314 = vld [vmem:[%s1 + $0x6a4] sm:$0xff]
    %v315 = vld [vmem:[%s1 + $0x6ac] sm:$0xff]
    %v316 = vld [vmem:[%s1 + $0x6b4] sm:$0xf]
    %v317 = vld [vmem:[%s1 + $0x6b8] sm:$0xff]
    %v318 = vld [vmem:[%s1 + $0x6c0] sm:$0xff]
    %v319 = vld [vmem:[%s1 + $0x6c8] sm:$0xf]
    %v320 = vld [vmem:[%s1 + $0x6cc] sm:$0xff]
    %v321 = vld [vmem:[%s1 + $0x6d4] sm:$0xff]
    %v322 = vld [vmem:[%s1 + $0x6dc] sm:$0xf]
    %v323 = vld [vmem:[%s1 + $0x6e0] sm:$0xff]
    %v324 = vld [vmem:[%s1 + $0x6e8] sm:$0xff]
    %v325 = vld [vmem:[%s1 + $0x6f0] sm:$0xf]
    %v326 = vld [vmem:[%s1 + $0x6f4] sm:$0xff]
    %v327 = vld [vmem:[%s1 + $0x6fc] sm:$0xff]
    %v328 = vld [vmem:[%s1 + $0x704] sm:$0xf]
    %v329 = vld [vmem:[%s1 + $0x708] sm:$0xff]
    %v330 = vld [vmem:[%s1 + $0x710] sm:$0xff]
    %v331 = vld [vmem:[%s1 + $0x718] sm:$0xf]
    %v332 = vld [vmem:[%s1 + $0x71c] sm:$0xff]
    %v333 = vld [vmem:[%s1 + $0x724] sm:$0xff]
    %v334 = vld [vmem:[%s1 + $0x72c] sm:$0xf]
    %v335 = vld [vmem:[%s1 + $0x730] sm:$0xff]
    %v336 = vld [vmem:[%s1 + $0x738] sm:$0xff]
    %v337 = vld [vmem:[%s1 + $0x740] sm:$0xf]
    %v338 = vld [vmem:[%s1 + $0x744] sm:$0xff]
    %v339 = vld [vmem:[%s1 + $0x74c] sm:$0xff]
    %v340 = vld [vmem:[%s1 + $0x754] sm:$0xf]
    %v341 = vld [vmem:[%s1 + $0x758] sm:$0xff]
    %v342 = vld [vmem:[%s1 + $0x760] sm:$0xff]
    %v343 = vld [vmem:[%s1 + $0x768] sm:$0xf]
    %v344 = vld [vmem:[%s1 + $0x76c] sm:$0xff]
    %v345 = vld [vmem:[%s1 + $0x774] sm:$0xff]
    %v346 = vld [vmem:[%s1 + $0x77c] sm:$0xf]
    %v347 = vld [vmem:[%s1 + $0x780] sm:$0xff]
    %v348 = vld [vmem:[%s1 + $0x788] sm:$0xff]
    %v349 = vld [vmem:[%s1 + $0x790] sm:$0xf]
    %v350 = vld [vmem:[%s1 + $0x794] sm:$0xff]
    %v351 = vld [vmem:[%s1 + $0x79c] sm:$0xff]
    %v352 = vld [vmem:[%s1 + $0x7a4] sm:$0xf]
    %v353 = vld [vmem:[%s1 + $0x7a8] sm:$0xff]
    %v354 = vld [vmem:[%s1 + $0x7b0] sm:$0xff]
    %v355 = vld [vmem:[%s1 + $0x7b8] sm:$0xf]
    %v356 = vld [vmem:[%s1 + $0x7bc] sm:$0xff]
    %v357 = vld [vmem:[%s1 + $0x7c4] sm:$0xff]
    %v358 = vld [vmem:[%s1 + $0x7cc] sm:$0xf]
    %v359 = vld [vmem:[%s1 + $0x7d0] sm:$0xff]
    %v360 = vld [vmem:[%s1 + $0x7d8] sm:$0xff]
    %v361 = vld [vmem:[%s1 + $0x7e0] sm:$0xf]
    %v362 = vld [vmem:[%s1 + $0x7e4] sm:$0xff]
    %v363 = vld [vmem:[%s1 + $0x7ec] sm:$0xff]
    %v364 = vld [vmem:[%s1 + $0x7f4] sm:$0xf]
    %v365 = vld [vmem:[%s1 + $0x7f8] sm:$0xff]
    %v366 = vld [vmem:[%s1 + $0x800] sm:$0xff]
    %v367 = vld [vmem:[%s1 + $0x808] sm:$0xf]
    %v368 = vld [vmem:[%s1 + $0x80c] sm:$0xff]
    %v369 = vld [vmem:[%s1 + $0x814] sm:$0xff]
    %v370 = vld [vmem:[%s1 + $0x81c] sm:$0xf]
    %v371 = vld [vmem:[%s1 + $0x820] sm:$0xff]
    %v372 = vld [vmem:[%s1 + $0x828] sm:$0xff]
    %v373 = vld [vmem:[%s1 + $0x830] sm:$0xf]
    %v374 = vld [vmem:[%s1 + $0x834] sm:$0xff]
    %v375 = vld [vmem:[%s1 + $0x83c] sm:$0xff]
    %v376 = vld [vmem:[%s1 + $0x844] sm:$0xf]
    %v377 = vld [vmem:[%s1 + $0x848] sm:$0xff]
    %v378 = vld [vmem:[%s1 + $0x850] sm:$0xff]
    %v379 = vld [vmem:[%s1 + $0x858] sm:$0xf]
    %v380 = vld [vmem:[%s1 + $0x85c] sm:$0xff]
    %v381 = vld [vmem:[%s1 + $0x864] sm:$0xff]
    %v382 = vld [vmem:[%s1 + $0x86c] sm:$0xf]
    %v383 = vld [vmem:[%s1 + $0x870] sm:$0xff]
    %v384 = vld [vmem:[%s1 + $0x878] sm:$0xff]
    %v385 = vld [vmem:[%s1 + $0x880] sm:$0xf]
    %v386 = vld [vmem:[%s1 + $0x884] sm:$0xff]
    %v387 = vld [vmem:[%s1 + $0x88c] sm:$0xff]
    %v388 = vld [vmem:[%s1 + $0x894] sm:$0xf]
    %v389 = vld [vmem:[%s1 + $0x898] sm:$0xff]
    %v390 = vld [vmem:[%s1 + $0x8a0] sm:$0xff]
    %v391 = vld [vmem:[%s1 + $0x8a8] sm:$0xf]
    %v392 = vld [vmem:[%s1 + $0x8ac] sm:$0xff]
    %v393 = vld [vmem:[%s1 + $0x8b4] sm:$0xff]
    %v394 = vld [vmem:[%s1 + $0x8bc] sm:$0xf]
    %v395 = vld [vmem:[%s1 + $0x8c0] sm:$0xff]
    %v396 = vld [vmem:[%s1 + $0x8c8] sm:$0xff]
    %v397 = vld [vmem:[%s1 + $0x8d0] sm:$0xf]
    %v398 = vld [vmem:[%s1 + $0x8d4] sm:$0xff]
    %v399 = vld [vmem:[%s1 + $0x8dc] sm:$0xff]
    %v400 = vld [vmem:[%s1 + $0x8e4] sm:$0xf]
    %v401 = vld [vmem:[%s1 + $0x8e8] sm:$0xff]
    %v402 = vld [vmem:[%s1 + $0x8f0] sm:$0xff]
    %v403 = vld [vmem:[%s1 + $0x8f8] sm:$0xf]
    %v404 = vld [vmem:[%s1 + $0x8fc] sm:$0xff]
    %v405 = vld [vmem:[%s1 + $0x904] sm:$0xff]
    %v406 = vld [vmem:[%s1 + $0x90c] sm:$0xf]
    %v407 = vld [vmem:[%s1 + $0x910] sm:$0xff]
    %v408 = vld [vmem:[%s1 + $0x918] sm:$0xff]
    %v409 = vld [vmem:[%s1 + $0x920] sm:$0xf]
    %v410 = vld [vmem:[%s1 + $0x924] sm:$0xff]
    %v411 = vld [vmem:[%s1 + $0x92c] sm:$0xff]
    %v412 = vld [vmem:[%s1 + $0x934] sm:$0xf]
    %v413 = vld [vmem:[%s1 + $0x938] sm:$0xff]
    %v414 = vld [vmem:[%s1 + $0x940] sm:$0xff]
    %v415 = vld [vmem:[%s1 + $0x948] sm:$0xf]
    %v416 = vld [vmem:[%s1 + $0x94c] sm:$0xff]
    %v417 = vld [vmem:[%s1 + $0x954] sm:$0xff]
    %v418 = vld [vmem:[%s1 + $0x95c] sm:$0xf]
    %v419 = vld [vmem:[%s1 + $0x960] sm:$0xff]
    %v420 = vld [vmem:[%s1 + $0x968] sm:$0xff]
    %v421 = vld [vmem:[%s1 + $0x970] sm:$0xf]
    %v422 = vld [vmem:[%s1 + $0x974] sm:$0xff]
    %v423 = vld [vmem:[%s1 + $0x97c] sm:$0xff]
    %v424 = vld [vmem:[%s1 + $0x984] sm:$0xf]
    %v425 = vld [vmem:[%s1 + $0x988] sm:$0xff]
    %v426 = vld [vmem:[%s1 + $0x990] sm:$0xff]
    %v427 = vld [vmem:[%s1 + $0x998] sm:$0xf]
    %v428 = vld [vmem:[%s1 + $0x99c] sm:$0xff]
    %v429 = vld [vmem:[%s1 + $0x9a4] sm:$0xff]
    %v430 = vld [vmem:[%s1 + $0x9ac] sm:$0xf]
    %v431 = vld [vmem:[%s1 + $0x9b0] sm:$0xff]
    %v432 = vld [vmem:[%s1 + $0x9b8] sm:$0xff]
    %v433 = vld [vmem:[%s1 + $0x9c0] sm:$0xf]
    %v434 = vld [vmem:[%s1 + $0x9c4] sm:$0xff]
    %v435 = vld [vmem:[%s1 + $0x9cc] sm:$0xff]
    %v436 = vld [vmem:[%s1 + $0x9d4] sm:$0xf]
    %v437 = vld [vmem:[%s1 + $0x9d8] sm:$0xff]
    %v438 = vld [vmem:[%s1 + $0x9e0] sm:$0xff]
    %v439 = vld [vmem:[%s1 + $0x9e8] sm:$0xf]
    %v440 = vld [vmem:[%s1 + $0x9ec] sm:$0xff]
    %v441 = vld [vmem:[%s1 + $0x9f4] sm:$0xff]
    %v442 = vld [vmem:[%s1 + $0x9fc] sm:$0xf]
    %v443 = vunpack.c.l.bf16 %v59
    %v444 = vunpack.c.h.bf16 %v59
    %v445 = vunpack.c.l.bf16 %v60
    %v446 = vunpack.c.h.bf16 %v60
    %v447 = vunpack.c.l.bf16 %v61
    %v448 = vunpack.c.l.bf16 %v62
    %v449 = vunpack.c.h.bf16 %v62
    %v450 = vunpack.c.l.bf16 %v63
    %v451 = vunpack.c.h.bf16 %v63
    %v452 = vunpack.c.l.bf16 %v64
    %v453 = vunpack.c.l.bf16 %v65
    %v454 = vunpack.c.h.bf16 %v65
    %v455 = vunpack.c.l.bf16 %v66
    %v456 = vunpack.c.h.bf16 %v66
    %v457 = vunpack.c.l.bf16 %v67
    %v458 = vunpack.c.l.bf16 %v68
    %v459 = vunpack.c.h.bf16 %v68
    %v460 = vunpack.c.l.bf16 %v69
    %v461 = vunpack.c.h.bf16 %v69
    %v462 = vunpack.c.l.bf16 %v70
    %v463 = vunpack.c.l.bf16 %v71
    %v464 = vunpack.c.h.bf16 %v71
    %v465 = vunpack.c.l.bf16 %v72
    %v466 = vunpack.c.h.bf16 %v72
    %v467 = vunpack.c.l.bf16 %v73
    %v468 = vunpack.c.l.bf16 %v74
    %v469 = vunpack.c.h.bf16 %v74
    %v470 = vunpack.c.l.bf16 %v75
    %v471 = vunpack.c.h.bf16 %v75
    %v472 = vunpack.c.l.bf16 %v76
    %v473 = vunpack.c.l.bf16 %v77
    %v474 = vunpack.c.h.bf16 %v77
    %v475 = vunpack.c.l.bf16 %v78
    %v476 = vunpack.c.h.bf16 %v78
    %v477 = vunpack.c.l.bf16 %v79
    %v478 = vunpack.c.l.bf16 %v80
    %v479 = vunpack.c.h.bf16 %v80
    %v480 = vunpack.c.l.bf16 %v81
    %v481 = vunpack.c.h.bf16 %v81
    %v482 = vunpack.c.l.bf16 %v82
    %v483 = vunpack.c.l.bf16 %v83
    %v484 = vunpack.c.h.bf16 %v83
    %v485 = vunpack.c.l.bf16 %v84
    %v486 = vunpack.c.h.bf16 %v84
    %v487 = vunpack.c.l.bf16 %v85
    %v488 = vunpack.c.l.bf16 %v86
    %v489 = vunpack.c.h.bf16 %v86
    %v490 = vunpack.c.l.bf16 %v87
    %v491 = vunpack.c.h.bf16 %v87
    %v492 = vunpack.c.l.bf16 %v88
    %v493 = vunpack.c.l.bf16 %v89
    %v494 = vunpack.c.h.bf16 %v89
    %v495 = vunpack.c.l.bf16 %v90
    %v496 = vunpack.c.h.bf16 %v90
    %v497 = vunpack.c.l.bf16 %v91
    %v498 = vunpack.c.l.bf16 %v92
    %v499 = vunpack.c.h.bf16 %v92
    %v500 = vunpack.c.l.bf16 %v93
    %v501 = vunpack.c.h.bf16 %v93
    %v502 = vunpack.c.l.bf16 %v94
    %v503 = vunpack.c.l.bf16 %v95
    %v504 = vunpack.c.h.bf16 %v95
    %v505 = vunpack.c.l.bf16 %v96
    %v506 = vunpack.c.h.bf16 %v96
    %v507 = vunpack.c.l.bf16 %v97
    %v508 = vunpack.c.l.bf16 %v98
    %v509 = vunpack.c.h.bf16 %v98
    %v510 = vunpack.c.l.bf16 %v99
    %v511 = vunpack.c.h.bf16 %v99
    %v512 = vunpack.c.l.bf16 %v100
    %v513 = vunpack.c.l.bf16 %v101
    %v514 = vunpack.c.h.bf16 %v101
    %v515 = vunpack.c.l.bf16 %v102
    %v516 = vunpack.c.h.bf16 %v102
    %v517 = vunpack.c.l.bf16 %v103
    %v518 = vunpack.c.l.bf16 %v104
    %v519 = vunpack.c.h.bf16 %v104
    %v520 = vunpack.c.l.bf16 %v105
    %v521 = vunpack.c.h.bf16 %v105
    %v522 = vunpack.c.l.bf16 %v106
    %v523 = vunpack.c.l.bf16 %v107
    %v524 = vunpack.c.h.bf16 %v107
    %v525 = vunpack.c.l.bf16 %v108
    %v526 = vunpack.c.h.bf16 %v108
    %v527 = vunpack.c.l.bf16 %v109
    %v528 = vunpack.c.l.bf16 %v110
    %v529 = vunpack.c.h.bf16 %v110
    %v530 = vunpack.c.l.bf16 %v111
    %v531 = vunpack.c.h.bf16 %v111
    %v532 = vunpack.c.l.bf16 %v112
    %v533 = vunpack.c.l.bf16 %v113
    %v534 = vunpack.c.h.bf16 %v113
    %v535 = vunpack.c.l.bf16 %v114
    %v536 = vunpack.c.h.bf16 %v114
    %v537 = vunpack.c.l.bf16 %v115
    %v538 = vunpack.c.l.bf16 %v116
    %v539 = vunpack.c.h.bf16 %v116
    %v540 = vunpack.c.l.bf16 %v117
    %v541 = vunpack.c.h.bf16 %v117
    %v542 = vunpack.c.l.bf16 %v118
    %v543 = vunpack.c.l.bf16 %v119
    %v544 = vunpack.c.h.bf16 %v119
    %v545 = vunpack.c.l.bf16 %v120
    %v546 = vunpack.c.h.bf16 %v120
    %v547 = vunpack.c.l.bf16 %v121
    %v548 = vunpack.c.l.bf16 %v122
    %v549 = vunpack.c.h.bf16 %v122
    %v550 = vunpack.c.l.bf16 %v123
    %v551 = vunpack.c.h.bf16 %v123
    %v552 = vunpack.c.l.bf16 %v124
    %v553 = vunpack.c.l.bf16 %v125
    %v554 = vunpack.c.h.bf16 %v125
    %v555 = vunpack.c.l.bf16 %v126
    %v556 = vunpack.c.h.bf16 %v126
    %v557 = vunpack.c.l.bf16 %v127
    %v558 = vunpack.c.l.bf16 %v128
    %v559 = vunpack.c.h.bf16 %v128
    %v560 = vunpack.c.l.bf16 %v129
    %v561 = vunpack.c.h.bf16 %v129
    %v562 = vunpack.c.l.bf16 %v130
    %v563 = vunpack.c.l.bf16 %v131
    %v564 = vunpack.c.h.bf16 %v131
    %v565 = vunpack.c.l.bf16 %v132
    %v566 = vunpack.c.h.bf16 %v132
    %v567 = vunpack.c.l.bf16 %v133
    %v568 = vunpack.c.l.bf16 %v134
    %v569 = vunpack.c.h.bf16 %v134
    %v570 = vunpack.c.l.bf16 %v135
    %v571 = vunpack.c.h.bf16 %v135
    %v572 = vunpack.c.l.bf16 %v136
    %v573 = vunpack.c.l.bf16 %v137
    %v574 = vunpack.c.h.bf16 %v137
    %v575 = vunpack.c.l.bf16 %v138
    %v576 = vunpack.c.h.bf16 %v138
    %v577 = vunpack.c.l.bf16 %v139
    %v578 = vunpack.c.l.bf16 %v140
    %v579 = vunpack.c.h.bf16 %v140
    %v580 = vunpack.c.l.bf16 %v141
    %v581 = vunpack.c.h.bf16 %v141
    %v582 = vunpack.c.l.bf16 %v142
    %v583 = vunpack.c.l.bf16 %v143
    %v584 = vunpack.c.h.bf16 %v143
    %v585 = vunpack.c.l.bf16 %v144
    %v586 = vunpack.c.h.bf16 %v144
    %v587 = vunpack.c.l.bf16 %v145
    %v588 = vunpack.c.l.bf16 %v146
    %v589 = vunpack.c.h.bf16 %v146
    %v590 = vunpack.c.l.bf16 %v147
    %v591 = vunpack.c.h.bf16 %v147
    %v592 = vunpack.c.l.bf16 %v148
    %v593 = vunpack.c.l.bf16 %v149
    %v594 = vunpack.c.h.bf16 %v149
    %v595 = vunpack.c.l.bf16 %v150
    %v596 = vunpack.c.h.bf16 %v150
    %v597 = vunpack.c.l.bf16 %v151
    %v598 = vunpack.c.l.bf16 %v152
    %v599 = vunpack.c.h.bf16 %v152
    %v600 = vunpack.c.l.bf16 %v153
    %v601 = vunpack.c.h.bf16 %v153
    %v602 = vunpack.c.l.bf16 %v154
    %v603 = vunpack.c.l.bf16 %v155
    %v604 = vunpack.c.h.bf16 %v155
    %v605 = vunpack.c.l.bf16 %v156
    %v606 = vunpack.c.h.bf16 %v156
    %v607 = vunpack.c.l.bf16 %v157
    %v608 = vunpack.c.l.bf16 %v158
    %v609 = vunpack.c.h.bf16 %v158
    %v610 = vunpack.c.l.bf16 %v159
    %v611 = vunpack.c.h.bf16 %v159
    %v612 = vunpack.c.l.bf16 %v160
    %v613 = vunpack.c.l.bf16 %v161
    %v614 = vunpack.c.h.bf16 %v161
    %v615 = vunpack.c.l.bf16 %v162
    %v616 = vunpack.c.h.bf16 %v162
    %v617 = vunpack.c.l.bf16 %v163
    %v618 = vunpack.c.l.bf16 %v164
    %v619 = vunpack.c.h.bf16 %v164
    %v620 = vunpack.c.l.bf16 %v165
    %v621 = vunpack.c.h.bf16 %v165
    %v622 = vunpack.c.l.bf16 %v166
    %v623 = vunpack.c.l.bf16 %v167
    %v624 = vunpack.c.h.bf16 %v167
    %v625 = vunpack.c.l.bf16 %v168
    %v626 = vunpack.c.h.bf16 %v168
    %v627 = vunpack.c.l.bf16 %v169
    %v628 = vunpack.c.l.bf16 %v170
    %v629 = vunpack.c.h.bf16 %v170
    %v630 = vunpack.c.l.bf16 %v171
    %v631 = vunpack.c.h.bf16 %v171
    %v632 = vunpack.c.l.bf16 %v172
    %v633 = vunpack.c.l.bf16 %v173
    %v634 = vunpack.c.h.bf16 %v173
    %v635 = vunpack.c.l.bf16 %v174
    %v636 = vunpack.c.h.bf16 %v174
    %v637 = vunpack.c.l.bf16 %v175
    %v638 = vunpack.c.l.bf16 %v176
    %v639 = vunpack.c.h.bf16 %v176
    %v640 = vunpack.c.l.bf16 %v177
    %v641 = vunpack.c.h.bf16 %v177
    %v642 = vunpack.c.l.bf16 %v178
    %v643 = vunpack.c.l.bf16 %v179
    %v644 = vunpack.c.h.bf16 %v179
    %v645 = vunpack.c.l.bf16 %v180
    %v646 = vunpack.c.h.bf16 %v180
    %v647 = vunpack.c.l.bf16 %v181
    %v648 = vunpack.c.l.bf16 %v182
    %v649 = vunpack.c.h.bf16 %v182
    %v650 = vunpack.c.l.bf16 %v183
    %v651 = vunpack.c.h.bf16 %v183
    %v652 = vunpack.c.l.bf16 %v184
    %v653 = vunpack.c.l.bf16 %v185
    %v654 = vunpack.c.h.bf16 %v185
    %v655 = vunpack.c.l.bf16 %v186
    %v656 = vunpack.c.h.bf16 %v186
    %v657 = vunpack.c.l.bf16 %v187
    %v658 = vunpack.c.l.bf16 %v188
    %v659 = vunpack.c.h.bf16 %v188
    %v660 = vunpack.c.l.bf16 %v189
    %v661 = vunpack.c.h.bf16 %v189
    %v662 = vunpack.c.l.bf16 %v190
    %v663 = vunpack.c.l.bf16 %v191
    %v664 = vunpack.c.h.bf16 %v191
    %v665 = vunpack.c.l.bf16 %v192
    %v666 = vunpack.c.h.bf16 %v192
    %v667 = vunpack.c.l.bf16 %v193
    %v668 = vunpack.c.l.bf16 %v194
    %v669 = vunpack.c.h.bf16 %v194
    %v670 = vunpack.c.l.bf16 %v195
    %v671 = vunpack.c.h.bf16 %v195
    %v672 = vunpack.c.l.bf16 %v196
    %v673 = vunpack.c.l.bf16 %v197
    %v674 = vunpack.c.h.bf16 %v197
    %v675 = vunpack.c.l.bf16 %v198
    %v676 = vunpack.c.h.bf16 %v198
    %v677 = vunpack.c.l.bf16 %v199
    %v678 = vunpack.c.l.bf16 %v200
    %v679 = vunpack.c.h.bf16 %v200
    %v680 = vunpack.c.l.bf16 %v201
    %v681 = vunpack.c.h.bf16 %v201
    %v682 = vunpack.c.l.bf16 %v202
    %v683 = vunpack.c.l.bf16 %v203
    %v684 = vunpack.c.h.bf16 %v203
    %v685 = vunpack.c.l.bf16 %v204
    %v686 = vunpack.c.h.bf16 %v204
    %v687 = vunpack.c.l.bf16 %v205
    %v688 = vunpack.c.l.bf16 %v206
    %v689 = vunpack.c.h.bf16 %v206
    %v690 = vunpack.c.l.bf16 %v207
    %v691 = vunpack.c.h.bf16 %v207
    %v692 = vunpack.c.l.bf16 %v208
    %v693 = vunpack.c.l.bf16 %v209
    %v694 = vunpack.c.h.bf16 %v209
    %v695 = vunpack.c.l.bf16 %v210
    %v696 = vunpack.c.h.bf16 %v210
    %v697 = vunpack.c.l.bf16 %v211
    %v698 = vunpack.c.l.bf16 %v212
    %v699 = vunpack.c.h.bf16 %v212
    %v700 = vunpack.c.l.bf16 %v213
    %v701 = vunpack.c.h.bf16 %v213
    %v702 = vunpack.c.l.bf16 %v214
    %v703 = vunpack.c.l.bf16 %v215
    %v704 = vunpack.c.h.bf16 %v215
    %v705 = vunpack.c.l.bf16 %v216
    %v706 = vunpack.c.h.bf16 %v216
    %v707 = vunpack.c.l.bf16 %v217
    %v708 = vunpack.c.l.bf16 %v218
    %v709 = vunpack.c.h.bf16 %v218
    %v710 = vunpack.c.l.bf16 %v219
    %v711 = vunpack.c.h.bf16 %v219
    %v712 = vunpack.c.l.bf16 %v220
    %v713 = vunpack.c.l.bf16 %v221
    %v714 = vunpack.c.h.bf16 %v221
    %v715 = vunpack.c.l.bf16 %v222
    %v716 = vunpack.c.h.bf16 %v222
    %v717 = vunpack.c.l.bf16 %v223
    %v718 = vunpack.c.l.bf16 %v224
    %v719 = vunpack.c.h.bf16 %v224
    %v720 = vunpack.c.l.bf16 %v225
    %v721 = vunpack.c.h.bf16 %v225
    %v722 = vunpack.c.l.bf16 %v226
    %v723 = vunpack.c.l.bf16 %v227
    %v724 = vunpack.c.h.bf16 %v227
    %v725 = vunpack.c.l.bf16 %v228
    %v726 = vunpack.c.h.bf16 %v228
    %v727 = vunpack.c.l.bf16 %v229
    %v728 = vunpack.c.l.bf16 %v230
    %v729 = vunpack.c.h.bf16 %v230
    %v730 = vunpack.c.l.bf16 %v231
    %v731 = vunpack.c.h.bf16 %v231
    %v732 = vunpack.c.l.bf16 %v232
    %v733 = vunpack.c.l.bf16 %v233
    %v734 = vunpack.c.h.bf16 %v233
    %v735 = vunpack.c.l.bf16 %v234
    %v736 = vunpack.c.h.bf16 %v234
    %v737 = vunpack.c.l.bf16 %v235
    %v738 = vunpack.c.l.bf16 %v236
    %v739 = vunpack.c.h.bf16 %v236
    %v740 = vunpack.c.l.bf16 %v237
    %v741 = vunpack.c.h.bf16 %v237
    %v742 = vunpack.c.l.bf16 %v238
    %v743 = vunpack.c.l.bf16 %v239
    %v744 = vunpack.c.h.bf16 %v239
    %v745 = vunpack.c.l.bf16 %v240
    %v746 = vunpack.c.h.bf16 %v240
    %v747 = vunpack.c.l.bf16 %v241
    %v748 = vunpack.c.l.bf16 %v242
    %v749 = vunpack.c.h.bf16 %v242
    %v750 = vunpack.c.l.bf16 %v243
    %v751 = vunpack.c.h.bf16 %v243
    %v752 = vunpack.c.l.bf16 %v244
    %v753 = vunpack.c.l.bf16 %v245
    %v754 = vunpack.c.h.bf16 %v245
    %v755 = vunpack.c.l.bf16 %v246
    %v756 = vunpack.c.h.bf16 %v246
    %v757 = vunpack.c.l.bf16 %v247
    %v758 = vunpack.c.l.bf16 %v248
    %v759 = vunpack.c.h.bf16 %v248
    %v760 = vunpack.c.l.bf16 %v249
    %v761 = vunpack.c.h.bf16 %v249
    %v762 = vunpack.c.l.bf16 %v250
    %v763 = vunpack.c.l.bf16 %v251
    %v764 = vunpack.c.h.bf16 %v251
    %v765 = vunpack.c.l.bf16 %v252
    %v766 = vunpack.c.h.bf16 %v252
    %v767 = vunpack.c.l.bf16 %v253
    %v768 = vunpack.c.l.bf16 %v254
    %v769 = vunpack.c.h.bf16 %v254
    %v770 = vunpack.c.l.bf16 %v255
    %v771 = vunpack.c.h.bf16 %v255
    %v772 = vunpack.c.l.bf16 %v256
    %v773 = vunpack.c.l.bf16 %v257
    %v774 = vunpack.c.h.bf16 %v257
    %v775 = vunpack.c.l.bf16 %v258
    %v776 = vunpack.c.h.bf16 %v258
    %v777 = vunpack.c.l.bf16 %v259
    %v778 = vunpack.c.l.bf16 %v260
    %v779 = vunpack.c.h.bf16 %v260
    %v780 = vunpack.c.l.bf16 %v261
    %v781 = vunpack.c.h.bf16 %v261
    %v782 = vunpack.c.l.bf16 %v262
    %v783 = vunpack.c.l.bf16 %v263
    %v784 = vunpack.c.h.bf16 %v263
    %v785 = vunpack.c.l.bf16 %v264
    %v786 = vunpack.c.h.bf16 %v264
    %v787 = vunpack.c.l.bf16 %v265
    %v788 = vunpack.c.l.bf16 %v266
    %v789 = vunpack.c.h.bf16 %v266
    %v790 = vunpack.c.l.bf16 %v267
    %v791 = vunpack.c.h.bf16 %v267
    %v792 = vunpack.c.l.bf16 %v268
    %v793 = vunpack.c.l.bf16 %v269
    %v794 = vunpack.c.h.bf16 %v269
    %v795 = vunpack.c.l.bf16 %v270
    %v796 = vunpack.c.h.bf16 %v270
    %v797 = vunpack.c.l.bf16 %v271
    %v798 = vunpack.c.l.bf16 %v272
    %v799 = vunpack.c.h.bf16 %v272
    %v800 = vunpack.c.l.bf16 %v273
    %v801 = vunpack.c.h.bf16 %v273
    %v802 = vunpack.c.l.bf16 %v274
    %v803 = vunpack.c.l.bf16 %v275
    %v804 = vunpack.c.h.bf16 %v275
    %v805 = vunpack.c.l.bf16 %v276
    %v806 = vunpack.c.h.bf16 %v276
    %v807 = vunpack.c.l.bf16 %v277
    %v808 = vunpack.c.l.bf16 %v278
    %v809 = vunpack.c.h.bf16 %v278
    %v810 = vunpack.c.l.bf16 %v279
    %v811 = vunpack.c.h.bf16 %v279
    %v812 = vunpack.c.l.bf16 %v280
    %v813 = vunpack.c.l.bf16 %v281
    %v814 = vunpack.c.h.bf16 %v281
    %v815 = vunpack.c.l.bf16 %v282
    %v816 = vunpack.c.h.bf16 %v282
    %v817 = vunpack.c.l.bf16 %v283
    %v818 = vunpack.c.l.bf16 %v284
    %v819 = vunpack.c.h.bf16 %v284
    %v820 = vunpack.c.l.bf16 %v285
    %v821 = vunpack.c.h.bf16 %v285
    %v822 = vunpack.c.l.bf16 %v286
    %v823 = vunpack.c.l.bf16 %v287
    %v824 = vunpack.c.h.bf16 %v287
    %v825 = vunpack.c.l.bf16 %v288
    %v826 = vunpack.c.h.bf16 %v288
    %v827 = vunpack.c.l.bf16 %v289
    %v828 = vunpack.c.l.bf16 %v290
    %v829 = vunpack.c.h.bf16 %v290
    %v830 = vunpack.c.l.bf16 %v291
    %v831 = vunpack.c.h.bf16 %v291
    %v832 = vunpack.c.l.bf16 %v292
    %v833 = vunpack.c.l.bf16 %v293
    %v834 = vunpack.c.h.bf16 %v293
    %v835 = vunpack.c.l.bf16 %v294
    %v836 = vunpack.c.h.bf16 %v294
    %v837 = vunpack.c.l.bf16 %v295
    %v838 = vunpack.c.l.bf16 %v296
    %v839 = vunpack.c.h.bf16 %v296
    %v840 = vunpack.c.l.bf16 %v297
    %v841 = vunpack.c.h.bf16 %v297
    %v842 = vunpack.c.l.bf16 %v298
    %v843 = vunpack.c.l.bf16 %v299
    %v844 = vunpack.c.h.bf16 %v299
    %v845 = vunpack.c.l.bf16 %v300
    %v846 = vunpack.c.h.bf16 %v300
    %v847 = vunpack.c.l.bf16 %v301
    %v848 = vunpack.c.l.bf16 %v302
    %v849 = vunpack.c.h.bf16 %v302
    %v850 = vunpack.c.l.bf16 %v303
    %v851 = vunpack.c.h.bf16 %v303
    %v852 = vunpack.c.l.bf16 %v304
    %v853 = vunpack.c.l.bf16 %v305
    %v854 = vunpack.c.h.bf16 %v305
    %v855 = vunpack.c.l.bf16 %v306
    %v856 = vunpack.c.h.bf16 %v306
    %v857 = vunpack.c.l.bf16 %v307
    %v858 = vunpack.c.l.bf16 %v308
    %v859 = vunpack.c.h.bf16 %v308
    %v860 = vunpack.c.l.bf16 %v309
    %v861 = vunpack.c.h.bf16 %v309
    %v862 = vunpack.c.l.bf16 %v310
    %v863 = vunpack.c.l.bf16 %v311
    %v864 = vunpack.c.h.bf16 %v311
    %v865 = vunpack.c.l.bf16 %v312
    %v866 = vunpack.c.h.bf16 %v312
    %v867 = vunpack.c.l.bf16 %v313
    %v868 = vunpack.c.l.bf16 %v314
    %v869 = vunpack.c.h.bf16 %v314
    %v870 = vunpack.c.l.bf16 %v315
    %v871 = vunpack.c.h.bf16 %v315
    %v872 = vunpack.c.l.bf16 %v316
    %v873 = vunpack.c.l.bf16 %v317
    %v874 = vunpack.c.h.bf16 %v317
    %v875 = vunpack.c.l.bf16 %v318
    %v876 = vunpack.c.h.bf16 %v318
    %v877 = vunpack.c.l.bf16 %v319
    %v878 = vunpack.c.l.bf16 %v320
    %v879 = vunpack.c.h.bf16 %v320
    %v880 = vunpack.c.l.bf16 %v321
    %v881 = vunpack.c.h.bf16 %v321
    %v882 = vunpack.c.l.bf16 %v322
    %v883 = vunpack.c.l.bf16 %v323
    %v884 = vunpack.c.h.bf16 %v323
    %v885 = vunpack.c.l.bf16 %v324
    %v886 = vunpack.c.h.bf16 %v324
    %v887 = vunpack.c.l.bf16 %v325
    %v888 = vunpack.c.l.bf16 %v326
    %v889 = vunpack.c.h.bf16 %v326
    %v890 = vunpack.c.l.bf16 %v327
    %v891 = vunpack.c.h.bf16 %v327
    %v892 = vunpack.c.l.bf16 %v328
    %v893 = vunpack.c.l.bf16 %v329
    %v894 = vunpack.c.h.bf16 %v329
    %v895 = vunpack.c.l.bf16 %v330
    %v896 = vunpack.c.h.bf16 %v330
    %v897 = vunpack.c.l.bf16 %v331
    %v898 = vunpack.c.l.bf16 %v332
    %v899 = vunpack.c.h.bf16 %v332
    %v900 = vunpack.c.l.bf16 %v333
    %v901 = vunpack.c.h.bf16 %v333
    %v902 = vunpack.c.l.bf16 %v334
    %v903 = vunpack.c.l.bf16 %v335
    %v904 = vunpack.c.h.bf16 %v335
    %v905 = vunpack.c.l.bf16 %v336
    %v906 = vunpack.c.h.bf16 %v336
    %v907 = vunpack.c.l.bf16 %v337
    %v908 = vunpack.c.l.bf16 %v338
    %v909 = vunpack.c.h.bf16 %v338
    %v910 = vunpack.c.l.bf16 %v339
    %v911 = vunpack.c.h.bf16 %v339
    %v912 = vunpack.c.l.bf16 %v340
    %v913 = vunpack.c.l.bf16 %v341
    %v914 = vunpack.c.h.bf16 %v341
    %v915 = vunpack.c.l.bf16 %v342
    %v916 = vunpack.c.h.bf16 %v342
    %v917 = vunpack.c.l.bf16 %v343
    %v918 = vunpack.c.l.bf16 %v344
    %v919 = vunpack.c.h.bf16 %v344
    %v920 = vunpack.c.l.bf16 %v345
    %v921 = vunpack.c.h.bf16 %v345
    %v922 = vunpack.c.l.bf16 %v346
    %v923 = vunpack.c.l.bf16 %v347
    %v924 = vunpack.c.h.bf16 %v347
    %v925 = vunpack.c.l.bf16 %v348
    %v926 = vunpack.c.h.bf16 %v348
    %v927 = vunpack.c.l.bf16 %v349
    %v928 = vunpack.c.l.bf16 %v350
    %v929 = vunpack.c.h.bf16 %v350
    %v930 = vunpack.c.l.bf16 %v351
    %v931 = vunpack.c.h.bf16 %v351
    %v932 = vunpack.c.l.bf16 %v352
    %v933 = vunpack.c.l.bf16 %v353
    %v934 = vunpack.c.h.bf16 %v353
    %v935 = vunpack.c.l.bf16 %v354
    %v936 = vunpack.c.h.bf16 %v354
    %v937 = vunpack.c.l.bf16 %v355
    %v938 = vunpack.c.l.bf16 %v356
    %v939 = vunpack.c.h.bf16 %v356
    %v940 = vunpack.c.l.bf16 %v357
    %v941 = vunpack.c.h.bf16 %v357
    %v942 = vunpack.c.l.bf16 %v358
    %v943 = vunpack.c.l.bf16 %v359
    %v944 = vunpack.c.h.bf16 %v359
    %v945 = vunpack.c.l.bf16 %v360
    %v946 = vunpack.c.h.bf16 %v360
    %v947 = vunpack.c.l.bf16 %v361
    %v948 = vunpack.c.l.bf16 %v362
    %v949 = vunpack.c.h.bf16 %v362
    %v950 = vunpack.c.l.bf16 %v363
    %v951 = vunpack.c.h.bf16 %v363
    %v952 = vunpack.c.l.bf16 %v364
    %v953 = vunpack.c.l.bf16 %v365
    %v954 = vunpack.c.h.bf16 %v365
    %v955 = vunpack.c.l.bf16 %v366
    %v956 = vunpack.c.h.bf16 %v366
    %v957 = vunpack.c.l.bf16 %v367
    %v958 = vunpack.c.l.bf16 %v368
    %v959 = vunpack.c.h.bf16 %v368
    %v960 = vunpack.c.l.bf16 %v369
    %v961 = vunpack.c.h.bf16 %v369
    %v962 = vunpack.c.l.bf16 %v370
    %v963 = vunpack.c.l.bf16 %v371
    %v964 = vunpack.c.h.bf16 %v371
    %v965 = vunpack.c.l.bf16 %v372
    %v966 = vunpack.c.h.bf16 %v372
    %v967 = vunpack.c.l.bf16 %v373
    %v968 = vunpack.c.l.bf16 %v374
    %v969 = vunpack.c.h.bf16 %v374
    %v970 = vunpack.c.l.bf16 %v375
    %v971 = vunpack.c.h.bf16 %v375
    %v972 = vunpack.c.l.bf16 %v376
    %v973 = vunpack.c.l.bf16 %v377
    %v974 = vunpack.c.h.bf16 %v377
    %v975 = vunpack.c.l.bf16 %v378
    %v976 = vunpack.c.h.bf16 %v378
    %v977 = vunpack.c.l.bf16 %v379
    %v978 = vunpack.c.l.bf16 %v380
    %v979 = vunpack.c.h.bf16 %v380
    %v980 = vunpack.c.l.bf16 %v381
    %v981 = vunpack.c.h.bf16 %v381
    %v982 = vunpack.c.l.bf16 %v382
    %v983 = vunpack.c.l.bf16 %v383
    %v984 = vunpack.c.h.bf16 %v383
    %v985 = vunpack.c.l.bf16 %v384
    %v986 = vunpack.c.h.bf16 %v384
    %v987 = vunpack.c.l.bf16 %v385
    %v988 = vunpack.c.l.bf16 %v386
    %v989 = vunpack.c.h.bf16 %v386
    %v990 = vunpack.c.l.bf16 %v387
    %v991 = vunpack.c.h.bf16 %v387
    %v992 = vunpack.c.l.bf16 %v388
    %v993 = vunpack.c.l.bf16 %v389
    %v994 = vunpack.c.h.bf16 %v389
    %v995 = vunpack.c.l.bf16 %v390
    %v996 = vunpack.c.h.bf16 %v390
    %v997 = vunpack.c.l.bf16 %v391
    %v998 = vunpack.c.l.bf16 %v392
    %v999 = vunpack.c.h.bf16 %v392
    %v1000 = vunpack.c.l.bf16 %v393
    %v1001 = vunpack.c.h.bf16 %v393
    %v1002 = vunpack.c.l.bf16 %v394
    %v1003 = vunpack.c.l.bf16 %v395
    %v1004 = vunpack.c.h.bf16 %v395
    %v1005 = vunpack.c.l.bf16 %v396
    %v1006 = vunpack.c.h.bf16 %v396
    %v1007 = vunpack.c.l.bf16 %v397
    %v1008 = vunpack.c.l.bf16 %v398
    %v1009 = vunpack.c.h.bf16 %v398
    %v1010 = vunpack.c.l.bf16 %v399
    %v1011 = vunpack.c.h.bf16 %v399
    %v1012 = vunpack.c.l.bf16 %v400
    %v1013 = vunpack.c.l.bf16 %v401
    %v1014 = vunpack.c.h.bf16 %v401
    %v1015 = vunpack.c.l.bf16 %v402
    %v1016 = vunpack.c.h.bf16 %v402
    %v1017 = vunpack.c.l.bf16 %v403
    %v1018 = vunpack.c.l.bf16 %v404
    %v1019 = vunpack.c.h.bf16 %v404
    %v1020 = vunpack.c.l.bf16 %v405
    %v1021 = vunpack.c.h.bf16 %v405
    %v1022 = vunpack.c.l.bf16 %v406
    %v1023 = vunpack.c.l.bf16 %v407
    %v1024 = vunpack.c.h.bf16 %v407
    %v1025 = vunpack.c.l.bf16 %v408
    %v1026 = vunpack.c.h.bf16 %v408
    %v1027 = vunpack.c.l.bf16 %v409
    %v1028 = vunpack.c.l.bf16 %v410
    %v1029 = vunpack.c.h.bf16 %v410
    %v1030 = vunpack.c.l.bf16 %v411
    %v1031 = vunpack.c.h.bf16 %v411
    %v1032 = vunpack.c.l.bf16 %v412
    %v1033 = vunpack.c.l.bf16 %v413
    %v1034 = vunpack.c.h.bf16 %v413
    %v1035 = vunpack.c.l.bf16 %v414
    %v1036 = vunpack.c.h.bf16 %v414
    %v1037 = vunpack.c.l.bf16 %v415
    %v1038 = vunpack.c.l.bf16 %v416
    %v1039 = vunpack.c.h.bf16 %v416
    %v1040 = vunpack.c.l.bf16 %v417
    %v1041 = vunpack.c.h.bf16 %v417
    %v1042 = vunpack.c.l.bf16 %v418
    %v1043 = vunpack.c.l.bf16 %v419
    %v1044 = vunpack.c.h.bf16 %v419
    %v1045 = vunpack.c.l.bf16 %v420
    %v1046 = vunpack.c.h.bf16 %v420
    %v1047 = vunpack.c.l.bf16 %v421
    %v1048 = vunpack.c.l.bf16 %v422
    %v1049 = vunpack.c.h.bf16 %v422
    %v1050 = vunpack.c.l.bf16 %v423
    %v1051 = vunpack.c.h.bf16 %v423
    %v1052 = vunpack.c.l.bf16 %v424
    %v1053 = vunpack.c.l.bf16 %v425
    %v1054 = vunpack.c.h.bf16 %v425
    %v1055 = vunpack.c.l.bf16 %v426
    %v1056 = vunpack.c.h.bf16 %v426
    %v1057 = vunpack.c.l.bf16 %v427
    %v1058 = vunpack.c.l.bf16 %v428
    %v1059 = vunpack.c.h.bf16 %v428
    %v1060 = vunpack.c.l.bf16 %v429
    %v1061 = vunpack.c.h.bf16 %v429
    %v1062 = vunpack.c.l.bf16 %v430
    %v1063 = vunpack.c.l.bf16 %v431
    %v1064 = vunpack.c.h.bf16 %v431
    %v1065 = vunpack.c.l.bf16 %v432
    %v1066 = vunpack.c.h.bf16 %v432
    %v1067 = vunpack.c.l.bf16 %v433
    %v1068 = vunpack.c.l.bf16 %v434
    %v1069 = vunpack.c.h.bf16 %v434
    %v1070 = vunpack.c.l.bf16 %v435
    %v1071 = vunpack.c.h.bf16 %v435
    %v1072 = vunpack.c.l.bf16 %v436
    %v1073 = vunpack.c.l.bf16 %v437
    %v1074 = vunpack.c.h.bf16 %v437
    %v1075 = vunpack.c.l.bf16 %v438
    %v1076 = vunpack.c.h.bf16 %v438
    %v1077 = vunpack.c.l.bf16 %v439
    %v1078 = vunpack.c.l.bf16 %v440
    %v1079 = vunpack.c.h.bf16 %v440
    %v1080 = vunpack.c.l.bf16 %v441
    %v1081 = vunpack.c.h.bf16 %v441
    %v1082 = vunpack.c.l.bf16 %v442
    %v1083 = vld [vmem:[%s2] sm:$0x1f]
    %v1085 = vperm.slane %v1083, 0
    %v1086 = vperm.slane %v1083, 1
    %v1087 = vperm.slane %v1083, 2
    %v1088 = vperm.slane %v1083, 3
    %v1089 = vperm.slane %v1083, 4
    %1095 = vmatpush.msra.mxu0 %v518
    %1096 = vmatpush.msra.mxu0 %v513
    %1097 = vmatpush.msra.mxu0 %v508
    %1098 = vmatpush.msra.mxu0 %v503
    %1099 = vmatpush.msra.mxu0 %v498
    %1100 = vmatpush.msra.mxu0 %v493
    %1101 = vmatpush.msra.mxu0 %v488
    %1102 = vmatpush.msra.mxu0 %v483
    %1103 = vmatpush.msra.mxu0 %v478
    %1104 = vmatpush.msra.mxu0 %v473
    %1105 = vmatpush.msra.mxu0 %v468
    %1106 = vmatpush.msra.mxu0 %v463
    %1107 = vmatpush.msra.mxu0 %v458
    %1108 = vmatpush.msra.mxu0 %v453
    %1109 = vmatpush.msra.mxu0 %v448
    %1110 = vmatpush.msra.mxu0 %v443
    %1111 = vmatmul.f32.gmra.mxu0 %v51
    %v1112 = vpop.f32.mrf.mxu0
    %v1113 = vadd.f32 %v1085, %v1112
    %1114 = vdwg.mxu0
    %1115 = vmatpush.msra.mxu0 %v598
    %1116 = vmatpush.msra.mxu0 %v593
    %1117 = vmatpush.msra.mxu0 %v588
    %1118 = vmatpush.msra.mxu0 %v583
    %1119 = vmatpush.msra.mxu0 %v578
    %1120 = vmatpush.msra.mxu0 %v573
    %1121 = vmatpush.msra.mxu0 %v568
    %1122 = vmatpush.msra.mxu0 %v563
    %1123 = vmatpush.msra.mxu0 %v558
    %1124 = vmatpush.msra.mxu0 %v553
    %1125 = vmatpush.msra.mxu0 %v548
    %1126 = vmatpush.msra.mxu0 %v543
    %1127 = vmatpush.msra.mxu0 %v538
    %1128 = vmatpush.msra.mxu0 %v533
    %1129 = vmatpush.msra.mxu0 %v528
    %1130 = vmatpush.msra.mxu0 %v523
    %1131 = vmatmul.f32.gmra.mxu0 %v52
    %v1132 = vpop.f32.mrf.mxu0
    %v1133 = vadd.f32 %v1113, %v1132
    %1134 = vdwg.mxu0
    %1135 = vmatpush.msra.mxu0 %v678
    %1136 = vmatpush.msra.mxu0 %v673
    %1137 = vmatpush.msra.mxu0 %v668
    %1138 = vmatpush.msra.mxu0 %v663
    %1139 = vmatpush.msra.mxu0 %v658
    %1140 = vmatpush.msra.mxu0 %v653
    %1141 = vmatpush.msra.mxu0 %v648
    %1142 = vmatpush.msra.mxu0 %v643
    %1143 = vmatpush.msra.mxu0 %v638
    %1144 = vmatpush.msra.mxu0 %v633
    %1145 = vmatpush.msra.mxu0 %v628
    %1146 = vmatpush.msra.mxu0 %v623
    %1147 = vmatpush.msra.mxu0 %v618
    %1148 = vmatpush.msra.mxu0 %v613
    %1149 = vmatpush.msra.mxu0 %v608
    %1150 = vmatpush.msra.mxu0 %v603
    %1151 = vmatmul.f32.gmra.mxu0 %v53
    %v1152 = vpop.f32.mrf.mxu0
    %v1153 = vadd.f32 %v1133, %v1152
    %1154 = vdwg.mxu0
    %1155 = vmatpush.msra.mxu0 %v758
    %1156 = vmatpush.msra.mxu0 %v753
    %1157 = vmatpush.msra.mxu0 %v748
    %1158 = vmatpush.msra.mxu0 %v743
    %1159 = vmatpush.msra.mxu0 %v738
    %1160 = vmatpush.msra.mxu0 %v733
    %1161 = vmatpush.msra.mxu0 %v728
    %1162 = vmatpush.msra.mxu0 %v723
    %1163 = vmatpush.msra.mxu0 %v718
    %1164 = vmatpush.msra.mxu0 %v713
    %1165 = vmatpush.msra.mxu0 %v708
    %1166 = vmatpush.msra.mxu0 %v703
    %1167 = vmatpush.msra.mxu0 %v698
    %1168 = vmatpush.msra.mxu0 %v693
    %1169 = vmatpush.msra.mxu0 %v688
    %1170 = vmatpush.msra.mxu0 %v683
    %1171 = vmatmul.f32.gmra.mxu0 %v54
    %v1172 = vpop.f32.mrf.mxu0
    %v1173 = vadd.f32 %v1153, %v1172
    %1174 = vdwg.mxu0
    %1175 = vmatpush.msra.mxu0 %v838
    %1176 = vmatpush.msra.mxu0 %v833
    %1177 = vmatpush.msra.mxu0 %v828
    %1178 = vmatpush.msra.mxu0 %v823
    %1179 = vmatpush.msra.mxu0 %v818
    %1180 = vmatpush.msra.mxu0 %v813
    %1181 = vmatpush.msra.mxu0 %v808
    %1182 = vmatpush.msra.mxu0 %v803
    %1183 = vmatpush.msra.mxu0 %v798
    %1184 = vmatpush.msra.mxu0 %v793
    %1185 = vmatpush.msra.mxu0 %v788
    %1186 = vmatpush.msra.mxu0 %v783
    %1187 = vmatpush.msra.mxu0 %v778
    %1188 = vmatpush.msra.mxu0 %v773
    %1189 = vmatpush.msra.mxu0 %v768
    %1190 = vmatpush.msra.mxu0 %v763
    %1191 = vmatmul.f32.gmra.mxu0 %v55
    %v1192 = vpop.f32.mrf.mxu0
    %v1193 = vadd.f32 %v1173, %v1192
    %1194 = vdwg.mxu0
    %1195 = vmatpush.msra.mxu0 %v918
    %1196 = vmatpush.msra.mxu0 %v913
    %1197 = vmatpush.msra.mxu0 %v908
    %1198 = vmatpush.msra.mxu0 %v903
    %1199 = vmatpush.msra.mxu0 %v898
    %1200 = vmatpush.msra.mxu0 %v893
    %1201 = vmatpush.msra.mxu0 %v888
    %1202 = vmatpush.msra.mxu0 %v883
    %1203 = vmatpush.msra.mxu0 %v878
    %1204 = vmatpush.msra.mxu0 %v873
    %1205 = vmatpush.msra.mxu0 %v868
    %1206 = vmatpush.msra.mxu0 %v863
    %1207 = vmatpush.msra.mxu0 %v858
    %1208 = vmatpush.msra.mxu0 %v853
    %1209 = vmatpush.msra.mxu0 %v848
    %1210 = vmatpush.msra.mxu0 %v843
    %1211 = vmatmul.f32.gmra.mxu0 %v56
    %v1212 = vpop.f32.mrf.mxu0
    %v1213 = vadd.f32 %v1193, %v1212
    %1214 = vdwg.mxu0
    %1215 = vmatpush.msra.mxu0 %v998
    %1216 = vmatpush.msra.mxu0 %v993
    %1217 = vmatpush.msra.mxu0 %v988
    %1218 = vmatpush.msra.mxu0 %v983
    %1219 = vmatpush.msra.mxu0 %v978
    %1220 = vmatpush.msra.mxu0 %v973
    %1221 = vmatpush.msra.mxu0 %v968
    %1222 = vmatpush.msra.mxu0 %v963
    %1223 = vmatpush.msra.mxu0 %v958
    %1224 = vmatpush.msra.mxu0 %v953
    %1225 = vmatpush.msra.mxu0 %v948
    %1226 = vmatpush.msra.mxu0 %v943
    %1227 = vmatpush.msra.mxu0 %v938
    %1228 = vmatpush.msra.mxu0 %v933
    %1229 = vmatpush.msra.mxu0 %v928
    %1230 = vmatpush.msra.mxu0 %v923
    %1231 = vmatmul.f32.gmra.mxu0 %v57
    %v1232 = vpop.f32.mrf.mxu0
    %v1233 = vadd.f32 %v1213, %v1232
    %1234 = vdwg.mxu0
    %1235 = vmatpush.msra.mxu0 %v1078
    %1236 = vmatpush.msra.mxu0 %v1073
    %1237 = vmatpush.msra.mxu0 %v1068
    %1238 = vmatpush.msra.mxu0 %v1063
    %1239 = vmatpush.msra.mxu0 %v1058
    %1240 = vmatpush.msra.mxu0 %v1053
    %1241 = vmatpush.msra.mxu0 %v1048
    %1242 = vmatpush.msra.mxu0 %v1043
    %1243 = vmatpush.msra.mxu0 %v1038
    %1244 = vmatpush.msra.mxu0 %v1033
    %1245 = vmatpush.msra.mxu0 %v1028
    %1246 = vmatpush.msra.mxu0 %v1023
    %1247 = vmatpush.msra.mxu0 %v1018
    %1248 = vmatpush.msra.mxu0 %v1013
    %1249 = vmatpush.msra.mxu0 %v1008
    %1250 = vmatpush.msra.mxu0 %v1003
    %1251 = vmatmul.f32.gmra.mxu0 %v58
    %v1252 = vpop.f32.mrf.mxu0
    %v1253 = vadd.f32 %v1233, %v1252
    %1254 = vdwg.mxu0
    %1255 = vmatpush.msra.mxu0 %v519
    %1256 = vmatpush.msra.mxu0 %v514
    %1257 = vmatpush.msra.mxu0 %v509
    %1258 = vmatpush.msra.mxu0 %v504
    %1259 = vmatpush.msra.mxu0 %v499
    %1260 = vmatpush.msra.mxu0 %v494
    %1261 = vmatpush.msra.mxu0 %v489
    %1262 = vmatpush.msra.mxu0 %v484
    %1263 = vmatpush.msra.mxu0 %v479
    %1264 = vmatpush.msra.mxu0 %v474
    %1265 = vmatpush.msra.mxu0 %v469
    %1266 = vmatpush.msra.mxu0 %v464
    %1267 = vmatpush.msra.mxu0 %v459
    %1268 = vmatpush.msra.mxu0 %v454
    %1269 = vmatpush.msra.mxu0 %v449
    %1270 = vmatpush.msra.mxu0 %v444
    %1271 = vmatmul.f32.gmra.mxu0 %v51
    %v1272 = vpop.f32.mrf.mxu0
    %v1273 = vadd.f32 %v1086, %v1272
    %1274 = vdwg.mxu0
    %1275 = vmatpush.msra.mxu0 %v599
    %1276 = vmatpush.msra.mxu0 %v594
    %1277 = vmatpush.msra.mxu0 %v589
    %1278 = vmatpush.msra.mxu0 %v584
    %1279 = vmatpush.msra.mxu0 %v579
    %1280 = vmatpush.msra.mxu0 %v574
    %1281 = vmatpush.msra.mxu0 %v569
    %1282 = vmatpush.msra.mxu0 %v564
    %1283 = vmatpush.msra.mxu0 %v559
    %1284 = vmatpush.msra.mxu0 %v554
    %1285 = vmatpush.msra.mxu0 %v549
    %1286 = vmatpush.msra.mxu0 %v544
    %1287 = vmatpush.msra.mxu0 %v539
    %1288 = vmatpush.msra.mxu0 %v534
    %1289 = vmatpush.msra.mxu0 %v529
    %1290 = vmatpush.msra.mxu0 %v524
    %1291 = vmatmul.f32.gmra.mxu0 %v52
    %v1292 = vpop.f32.mrf.mxu0
    %v1293 = vadd.f32 %v1273, %v1292
    %1294 = vdwg.mxu0
    %1295 = vmatpush.msra.mxu0 %v679
    %1296 = vmatpush.msra.mxu0 %v674
    %1297 = vmatpush.msra.mxu0 %v669
    %1298 = vmatpush.msra.mxu0 %v664
    %1299 = vmatpush.msra.mxu0 %v659
    %1300 = vmatpush.msra.mxu0 %v654
    %1301 = vmatpush.msra.mxu0 %v649
    %1302 = vmatpush.msra.mxu0 %v644
    %1303 = vmatpush.msra.mxu0 %v639
    %1304 = vmatpush.msra.mxu0 %v634
    %1305 = vmatpush.msra.mxu0 %v629
    %1306 = vmatpush.msra.mxu0 %v624
    %1307 = vmatpush.msra.mxu0 %v619
    %1308 = vmatpush.msra.mxu0 %v614
    %1309 = vmatpush.msra.mxu0 %v609
    %1310 = vmatpush.msra.mxu0 %v604
    %1311 = vmatmul.f32.gmra.mxu0 %v53
    %v1312 = vpop.f32.mrf.mxu0
    %v1313 = vadd.f32 %v1293, %v1312
    %1314 = vdwg.mxu0
    %1315 = vmatpush.msra.mxu0 %v759
    %1316 = vmatpush.msra.mxu0 %v754
    %1317 = vmatpush.msra.mxu0 %v749
    %1318 = vmatpush.msra.mxu0 %v744
    %1319 = vmatpush.msra.mxu0 %v739
    %1320 = vmatpush.msra.mxu0 %v734
    %1321 = vmatpush.msra.mxu0 %v729
    %1322 = vmatpush.msra.mxu0 %v724
    %1323 = vmatpush.msra.mxu0 %v719
    %1324 = vmatpush.msra.mxu0 %v714
    %1325 = vmatpush.msra.mxu0 %v709
    %1326 = vmatpush.msra.mxu0 %v704
    %1327 = vmatpush.msra.mxu0 %v699
    %1328 = vmatpush.msra.mxu0 %v694
    %1329 = vmatpush.msra.mxu0 %v689
    %1330 = vmatpush.msra.mxu0 %v684
    %1331 = vmatmul.f32.gmra.mxu0 %v54
    %v1332 = vpop.f32.mrf.mxu0
    %v1333 = vadd.f32 %v1313, %v1332
    %1334 = vdwg.mxu0
    %1335 = vmatpush.msra.mxu0 %v839
    %1336 = vmatpush.msra.mxu0 %v834
    %1337 = vmatpush.msra.mxu0 %v829
    %1338 = vmatpush.msra.mxu0 %v824
    %1339 = vmatpush.msra.mxu0 %v819
    %1340 = vmatpush.msra.mxu0 %v814
    %1341 = vmatpush.msra.mxu0 %v809
    %1342 = vmatpush.msra.mxu0 %v804
    %1343 = vmatpush.msra.mxu0 %v799
    %1344 = vmatpush.msra.mxu0 %v794
    %1345 = vmatpush.msra.mxu0 %v789
    %1346 = vmatpush.msra.mxu0 %v784
    %1347 = vmatpush.msra.mxu0 %v779
    %1348 = vmatpush.msra.mxu0 %v774
    %1349 = vmatpush.msra.mxu0 %v769
    %1350 = vmatpush.msra.mxu0 %v764
    %1351 = vmatmul.f32.gmra.mxu0 %v55
    %v1352 = vpop.f32.mrf.mxu0
    %v1353 = vadd.f32 %v1333, %v1352
    %1354 = vdwg.mxu0
    %1355 = vmatpush.msra.mxu0 %v919
    %1356 = vmatpush.msra.mxu0 %v914
    %1357 = vmatpush.msra.mxu0 %v909
    %1358 = vmatpush.msra.mxu0 %v904
    %1359 = vmatpush.msra.mxu0 %v899
    %1360 = vmatpush.msra.mxu0 %v894
    %1361 = vmatpush.msra.mxu0 %v889
    %1362 = vmatpush.msra.mxu0 %v884
    %1363 = vmatpush.msra.mxu0 %v879
    %1364 = vmatpush.msra.mxu0 %v874
    %1365 = vmatpush.msra.mxu0 %v869
    %1366 = vmatpush.msra.mxu0 %v864
    %1367 = vmatpush.msra.mxu0 %v859
    %1368 = vmatpush.msra.mxu0 %v854
    %1369 = vmatpush.msra.mxu0 %v849
    %1370 = vmatpush.msra.mxu0 %v844
    %1371 = vmatmul.f32.gmra.mxu0 %v56
    %v1372 = vpop.f32.mrf.mxu0
    %v1373 = vadd.f32 %v1353, %v1372
    %1374 = vdwg.mxu0
    %1375 = vmatpush.msra.mxu0 %v999
    %1376 = vmatpush.msra.mxu0 %v994
    %1377 = vmatpush.msra.mxu0 %v989
    %1378 = vmatpush.msra.mxu0 %v984
    %1379 = vmatpush.msra.mxu0 %v979
    %1380 = vmatpush.msra.mxu0 %v974
    %1381 = vmatpush.msra.mxu0 %v969
    %1382 = vmatpush.msra.mxu0 %v964
    %1383 = vmatpush.msra.mxu0 %v959
    %1384 = vmatpush.msra.mxu0 %v954
    %1385 = vmatpush.msra.mxu0 %v949
    %1386 = vmatpush.msra.mxu0 %v944
    %1387 = vmatpush.msra.mxu0 %v939
    %1388 = vmatpush.msra.mxu0 %v934
    %1389 = vmatpush.msra.mxu0 %v929
    %1390 = vmatpush.msra.mxu0 %v924
    %1391 = vmatmul.f32.gmra.mxu0 %v57
    %v1392 = vpop.f32.mrf.mxu0
    %v1393 = vadd.f32 %v1373, %v1392
    %1394 = vdwg.mxu0
    %1395 = vmatpush.msra.mxu0 %v1079
    %1396 = vmatpush.msra.mxu0 %v1074
    %1397 = vmatpush.msra.mxu0 %v1069
    %1398 = vmatpush.msra.mxu0 %v1064
    %1399 = vmatpush.msra.mxu0 %v1059
    %1400 = vmatpush.msra.mxu0 %v1054
    %1401 = vmatpush.msra.mxu0 %v1049
    %1402 = vmatpush.msra.mxu0 %v1044
    %1403 = vmatpush.msra.mxu0 %v1039
    %1404 = vmatpush.msra.mxu0 %v1034
    %1405 = vmatpush.msra.mxu0 %v1029
    %1406 = vmatpush.msra.mxu0 %v1024
    %1407 = vmatpush.msra.mxu0 %v1019
    %1408 = vmatpush.msra.mxu0 %v1014
    %1409 = vmatpush.msra.mxu0 %v1009
    %1410 = vmatpush.msra.mxu0 %v1004
    %1411 = vmatmul.f32.gmra.mxu0 %v58
    %v1412 = vpop.f32.mrf.mxu0
    %v1413 = vadd.f32 %v1393, %v1412
    %1414 = vdwg.mxu0
    %1415 = vmatpush.msra.mxu0 %v520
    %1416 = vmatpush.msra.mxu0 %v515
    %1417 = vmatpush.msra.mxu0 %v510
    %1418 = vmatpush.msra.mxu0 %v505
    %1419 = vmatpush.msra.mxu0 %v500
    %1420 = vmatpush.msra.mxu0 %v495
    %1421 = vmatpush.msra.mxu0 %v490
    %1422 = vmatpush.msra.mxu0 %v485
    %1423 = vmatpush.msra.mxu0 %v480
    %1424 = vmatpush.msra.mxu0 %v475
    %1425 = vmatpush.msra.mxu0 %v470
    %1426 = vmatpush.msra.mxu0 %v465
    %1427 = vmatpush.msra.mxu0 %v460
    %1428 = vmatpush.msra.mxu0 %v455
    %1429 = vmatpush.msra.mxu0 %v450
    %1430 = vmatpush.msra.mxu0 %v445
    %1431 = vmatmul.f32.gmra.mxu0 %v51
    %v1432 = vpop.f32.mrf.mxu0
    %v1433 = vadd.f32 %v1087, %v1432
    %1434 = vdwg.mxu0
    %1435 = vmatpush.msra.mxu0 %v600
    %1436 = vmatpush.msra.mxu0 %v595
    %1437 = vmatpush.msra.mxu0 %v590
    %1438 = vmatpush.msra.mxu0 %v585
    %1439 = vmatpush.msra.mxu0 %v580
    %1440 = vmatpush.msra.mxu0 %v575
    %1441 = vmatpush.msra.mxu0 %v570
    %1442 = vmatpush.msra.mxu0 %v565
    %1443 = vmatpush.msra.mxu0 %v560
    %1444 = vmatpush.msra.mxu0 %v555
    %1445 = vmatpush.msra.mxu0 %v550
    %1446 = vmatpush.msra.mxu0 %v545
    %1447 = vmatpush.msra.mxu0 %v540
    %1448 = vmatpush.msra.mxu0 %v535
    %1449 = vmatpush.msra.mxu0 %v530
    %1450 = vmatpush.msra.mxu0 %v525
    %1451 = vmatmul.f32.gmra.mxu0 %v52
    %v1452 = vpop.f32.mrf.mxu0
    %v1453 = vadd.f32 %v1433, %v1452
    %1454 = vdwg.mxu0
    %1455 = vmatpush.msra.mxu0 %v680
    %1456 = vmatpush.msra.mxu0 %v675
    %1457 = vmatpush.msra.mxu0 %v670
    %1458 = vmatpush.msra.mxu0 %v665
    %1459 = vmatpush.msra.mxu0 %v660
    %1460 = vmatpush.msra.mxu0 %v655
    %1461 = vmatpush.msra.mxu0 %v650
    %1462 = vmatpush.msra.mxu0 %v645
    %1463 = vmatpush.msra.mxu0 %v640
    %1464 = vmatpush.msra.mxu0 %v635
    %1465 = vmatpush.msra.mxu0 %v630
    %1466 = vmatpush.msra.mxu0 %v625
    %1467 = vmatpush.msra.mxu0 %v620
    %1468 = vmatpush.msra.mxu0 %v615
    %1469 = vmatpush.msra.mxu0 %v610
    %1470 = vmatpush.msra.mxu0 %v605
    %1471 = vmatmul.f32.gmra.mxu0 %v53
    %v1472 = vpop.f32.mrf.mxu0
    %v1473 = vadd.f32 %v1453, %v1472
    %1474 = vdwg.mxu0
    %1475 = vmatpush.msra.mxu0 %v760
    %1476 = vmatpush.msra.mxu0 %v755
    %1477 = vmatpush.msra.mxu0 %v750
    %1478 = vmatpush.msra.mxu0 %v745
    %1479 = vmatpush.msra.mxu0 %v740
    %1480 = vmatpush.msra.mxu0 %v735
    %1481 = vmatpush.msra.mxu0 %v730
    %1482 = vmatpush.msra.mxu0 %v725
    %1483 = vmatpush.msra.mxu0 %v720
    %1484 = vmatpush.msra.mxu0 %v715
    %1485 = vmatpush.msra.mxu0 %v710
    %1486 = vmatpush.msra.mxu0 %v705
    %1487 = vmatpush.msra.mxu0 %v700
    %1488 = vmatpush.msra.mxu0 %v695
    %1489 = vmatpush.msra.mxu0 %v690
    %1490 = vmatpush.msra.mxu0 %v685
    %1491 = vmatmul.f32.gmra.mxu0 %v54
    %v1492 = vpop.f32.mrf.mxu0
    %v1493 = vadd.f32 %v1473, %v1492
    %1494 = vdwg.mxu0
    %1495 = vmatpush.msra.mxu0 %v840
    %1496 = vmatpush.msra.mxu0 %v835
    %1497 = vmatpush.msra.mxu0 %v830
    %1498 = vmatpush.msra.mxu0 %v825
    %1499 = vmatpush.msra.mxu0 %v820
    %1500 = vmatpush.msra.mxu0 %v815
    %1501 = vmatpush.msra.mxu0 %v810
    %1502 = vmatpush.msra.mxu0 %v805
    %1503 = vmatpush.msra.mxu0 %v800
    %1504 = vmatpush.msra.mxu0 %v795
    %1505 = vmatpush.msra.mxu0 %v790
    %1506 = vmatpush.msra.mxu0 %v785
    %1507 = vmatpush.msra.mxu0 %v780
    %1508 = vmatpush.msra.mxu0 %v775
    %1509 = vmatpush.msra.mxu0 %v770
    %1510 = vmatpush.msra.mxu0 %v765
    %1511 = vmatmul.f32.gmra.mxu0 %v55
    %v1512 = vpop.f32.mrf.mxu0
    %v1513 = vadd.f32 %v1493, %v1512
    %1514 = vdwg.mxu0
    %1515 = vmatpush.msra.mxu0 %v920
    %1516 = vmatpush.msra.mxu0 %v915
    %1517 = vmatpush.msra.mxu0 %v910
    %1518 = vmatpush.msra.mxu0 %v905
    %1519 = vmatpush.msra.mxu0 %v900
    %1520 = vmatpush.msra.mxu0 %v895
    %1521 = vmatpush.msra.mxu0 %v890
    %1522 = vmatpush.msra.mxu0 %v885
    %1523 = vmatpush.msra.mxu0 %v880
    %1524 = vmatpush.msra.mxu0 %v875
    %1525 = vmatpush.msra.mxu0 %v870
    %1526 = vmatpush.msra.mxu0 %v865
    %1527 = vmatpush.msra.mxu0 %v860
    %1528 = vmatpush.msra.mxu0 %v855
    %1529 = vmatpush.msra.mxu0 %v850
    %1530 = vmatpush.msra.mxu0 %v845
    %1531 = vmatmul.f32.gmra.mxu0 %v56
    %v1532 = vpop.f32.mrf.mxu0
    %v1533 = vadd.f32 %v1513, %v1532
    %1534 = vdwg.mxu0
    %1535 = vmatpush.msra.mxu0 %v1000
    %1536 = vmatpush.msra.mxu0 %v995
    %1537 = vmatpush.msra.mxu0 %v990
    %1538 = vmatpush.msra.mxu0 %v985
    %1539 = vmatpush.msra.mxu0 %v980
    %1540 = vmatpush.msra.mxu0 %v975
    %1541 = vmatpush.msra.mxu0 %v970
    %1542 = vmatpush.msra.mxu0 %v965
    %1543 = vmatpush.msra.mxu0 %v960
    %1544 = vmatpush.msra.mxu0 %v955
    %1545 = vmatpush.msra.mxu0 %v950
    %1546 = vmatpush.msra.mxu0 %v945
    %1547 = vmatpush.msra.mxu0 %v940
    %1548 = vmatpush.msra.mxu0 %v935
    %1549 = vmatpush.msra.mxu0 %v930
    %1550 = vmatpush.msra.mxu0 %v925
    %1551 = vmatmul.f32.gmra.mxu0 %v57
    %v1552 = vpop.f32.mrf.mxu0
    %v1553 = vadd.f32 %v1533, %v1552
    %1554 = vdwg.mxu0
    %1555 = vmatpush.msra.mxu0 %v1080
    %1556 = vmatpush.msra.mxu0 %v1075
    %1557 = vmatpush.msra.mxu0 %v1070
    %1558 = vmatpush.msra.mxu0 %v1065
    %1559 = vmatpush.msra.mxu0 %v1060
    %1560 = vmatpush.msra.mxu0 %v1055
    %1561 = vmatpush.msra.mxu0 %v1050
    %1562 = vmatpush.msra.mxu0 %v1045
    %1563 = vmatpush.msra.mxu0 %v1040
    %1564 = vmatpush.msra.mxu0 %v1035
    %1565 = vmatpush.msra.mxu0 %v1030
    %1566 = vmatpush.msra.mxu0 %v1025
    %1567 = vmatpush.msra.mxu0 %v1020
    %1568 = vmatpush.msra.mxu0 %v1015
    %1569 = vmatpush.msra.mxu0 %v1010
    %1570 = vmatpush.msra.mxu0 %v1005
    %1571 = vmatmul.f32.gmra.mxu0 %v58
    %v1572 = vpop.f32.mrf.mxu0
    %v1573 = vadd.f32 %v1553, %v1572
    %1574 = vdwg.mxu0
    %1575 = vmatpush.msra.mxu0 %v521
    %1576 = vmatpush.msra.mxu0 %v516
    %1577 = vmatpush.msra.mxu0 %v511
    %1578 = vmatpush.msra.mxu0 %v506
    %1579 = vmatpush.msra.mxu0 %v501
    %1580 = vmatpush.msra.mxu0 %v496
    %1581 = vmatpush.msra.mxu0 %v491
    %1582 = vmatpush.msra.mxu0 %v486
    %1583 = vmatpush.msra.mxu0 %v481
    %1584 = vmatpush.msra.mxu0 %v476
    %1585 = vmatpush.msra.mxu0 %v471
    %1586 = vmatpush.msra.mxu0 %v466
    %1587 = vmatpush.msra.mxu0 %v461
    %1588 = vmatpush.msra.mxu0 %v456
    %1589 = vmatpush.msra.mxu0 %v451
    %1590 = vmatpush.msra.mxu0 %v446
    %1591 = vmatmul.f32.gmra.mxu0 %v51
    %v1592 = vpop.f32.mrf.mxu0
    %v1593 = vadd.f32 %v1088, %v1592
    %1594 = vdwg.mxu0
    %1595 = vmatpush.msra.mxu0 %v601
    %1596 = vmatpush.msra.mxu0 %v596
    %1597 = vmatpush.msra.mxu0 %v591
    %1598 = vmatpush.msra.mxu0 %v586
    %1599 = vmatpush.msra.mxu0 %v581
    %1600 = vmatpush.msra.mxu0 %v576
    %1601 = vmatpush.msra.mxu0 %v571
    %1602 = vmatpush.msra.mxu0 %v566
    %1603 = vmatpush.msra.mxu0 %v561
    %1604 = vmatpush.msra.mxu0 %v556
    %1605 = vmatpush.msra.mxu0 %v551
    %1606 = vmatpush.msra.mxu0 %v546
    %1607 = vmatpush.msra.mxu0 %v541
    %1608 = vmatpush.msra.mxu0 %v536
    %1609 = vmatpush.msra.mxu0 %v531
    %1610 = vmatpush.msra.mxu0 %v526
    %1611 = vmatmul.f32.gmra.mxu0 %v52
    %v1612 = vpop.f32.mrf.mxu0
    %v1613 = vadd.f32 %v1593, %v1612
    %1614 = vdwg.mxu0
    %1615 = vmatpush.msra.mxu0 %v681
    %1616 = vmatpush.msra.mxu0 %v676
    %1617 = vmatpush.msra.mxu0 %v671
    %1618 = vmatpush.msra.mxu0 %v666
    %1619 = vmatpush.msra.mxu0 %v661
    %1620 = vmatpush.msra.mxu0 %v656
    %1621 = vmatpush.msra.mxu0 %v651
    %1622 = vmatpush.msra.mxu0 %v646
    %1623 = vmatpush.msra.mxu0 %v641
    %1624 = vmatpush.msra.mxu0 %v636
    %1625 = vmatpush.msra.mxu0 %v631
    %1626 = vmatpush.msra.mxu0 %v626
    %1627 = vmatpush.msra.mxu0 %v621
    %1628 = vmatpush.msra.mxu0 %v616
    %1629 = vmatpush.msra.mxu0 %v611
    %1630 = vmatpush.msra.mxu0 %v606
    %1631 = vmatmul.f32.gmra.mxu0 %v53
    %v1632 = vpop.f32.mrf.mxu0
    %v1633 = vadd.f32 %v1613, %v1632
    %1634 = vdwg.mxu0
    %1635 = vmatpush.msra.mxu0 %v761
    %1636 = vmatpush.msra.mxu0 %v756
    %1637 = vmatpush.msra.mxu0 %v751
    %1638 = vmatpush.msra.mxu0 %v746
    %1639 = vmatpush.msra.mxu0 %v741
    %1640 = vmatpush.msra.mxu0 %v736
    %1641 = vmatpush.msra.mxu0 %v731
    %1642 = vmatpush.msra.mxu0 %v726
    %1643 = vmatpush.msra.mxu0 %v721
    %1644 = vmatpush.msra.mxu0 %v716
    %1645 = vmatpush.msra.mxu0 %v711
    %1646 = vmatpush.msra.mxu0 %v706
    %1647 = vmatpush.msra.mxu0 %v701
    %1648 = vmatpush.msra.mxu0 %v696
    %1649 = vmatpush.msra.mxu0 %v691
    %1650 = vmatpush.msra.mxu0 %v686
    %1651 = vmatmul.f32.gmra.mxu0 %v54
    %v1652 = vpop.f32.mrf.mxu0
    %v1653 = vadd.f32 %v1633, %v1652
    %1654 = vdwg.mxu0
    %1655 = vmatpush.msra.mxu0 %v841
    %1656 = vmatpush.msra.mxu0 %v836
    %1657 = vmatpush.msra.mxu0 %v831
    %1658 = vmatpush.msra.mxu0 %v826
    %1659 = vmatpush.msra.mxu0 %v821
    %1660 = vmatpush.msra.mxu0 %v816
    %1661 = vmatpush.msra.mxu0 %v811
    %1662 = vmatpush.msra.mxu0 %v806
    %1663 = vmatpush.msra.mxu0 %v801
    %1664 = vmatpush.msra.mxu0 %v796
    %1665 = vmatpush.msra.mxu0 %v791
    %1666 = vmatpush.msra.mxu0 %v786
    %1667 = vmatpush.msra.mxu0 %v781
    %1668 = vmatpush.msra.mxu0 %v776
    %1669 = vmatpush.msra.mxu0 %v771
    %1670 = vmatpush.msra.mxu0 %v766
    %1671 = vmatmul.f32.gmra.mxu0 %v55
    %v1672 = vpop.f32.mrf.mxu0
    %v1673 = vadd.f32 %v1653, %v1672
    %1674 = vdwg.mxu0
    %1675 = vmatpush.msra.mxu0 %v921
    %1676 = vmatpush.msra.mxu0 %v916
    %1677 = vmatpush.msra.mxu0 %v911
    %1678 = vmatpush.msra.mxu0 %v906
    %1679 = vmatpush.msra.mxu0 %v901
    %1680 = vmatpush.msra.mxu0 %v896
    %1681 = vmatpush.msra.mxu0 %v891
    %1682 = vmatpush.msra.mxu0 %v886
    %1683 = vmatpush.msra.mxu0 %v881
    %1684 = vmatpush.msra.mxu0 %v876
    %1685 = vmatpush.msra.mxu0 %v871
    %1686 = vmatpush.msra.mxu0 %v866
    %1687 = vmatpush.msra.mxu0 %v861
    %1688 = vmatpush.msra.mxu0 %v856
    %1689 = vmatpush.msra.mxu0 %v851
    %1690 = vmatpush.msra.mxu0 %v846
    %1691 = vmatmul.f32.gmra.mxu0 %v56
    %v1692 = vpop.f32.mrf.mxu0
    %v1693 = vadd.f32 %v1673, %v1692
    %1694 = vdwg.mxu0
    %1695 = vmatpush.msra.mxu0 %v1001
    %1696 = vmatpush.msra.mxu0 %v996
    %1697 = vmatpush.msra.mxu0 %v991
    %1698 = vmatpush.msra.mxu0 %v986
    %1699 = vmatpush.msra.mxu0 %v981
    %1700 = vmatpush.msra.mxu0 %v976
    %1701 = vmatpush.msra.mxu0 %v971
    %1702 = vmatpush.msra.mxu0 %v966
    %1703 = vmatpush.msra.mxu0 %v961
    %1704 = vmatpush.msra.mxu0 %v956
    %1705 = vmatpush.msra.mxu0 %v951
    %1706 = vmatpush.msra.mxu0 %v946
    %1707 = vmatpush.msra.mxu0 %v941
    %1708 = vmatpush.msra.mxu0 %v936
    %1709 = vmatpush.msra.mxu0 %v931
    %1710 = vmatpush.msra.mxu0 %v926
    %1711 = vmatmul.f32.gmra.mxu0 %v57
    %v1712 = vpop.f32.mrf.mxu0
    %v1713 = vadd.f32 %v1693, %v1712
    %1714 = vdwg.mxu0
    %1715 = vmatpush.msra.mxu0 %v1081
    %1716 = vmatpush.msra.mxu0 %v1076
    %1717 = vmatpush.msra.mxu0 %v1071
    %1718 = vmatpush.msra.mxu0 %v1066
    %1719 = vmatpush.msra.mxu0 %v1061
    %1720 = vmatpush.msra.mxu0 %v1056
    %1721 = vmatpush.msra.mxu0 %v1051
    %1722 = vmatpush.msra.mxu0 %v1046
    %1723 = vmatpush.msra.mxu0 %v1041
    %1724 = vmatpush.msra.mxu0 %v1036
    %1725 = vmatpush.msra.mxu0 %v1031
    %1726 = vmatpush.msra.mxu0 %v1026
    %1727 = vmatpush.msra.mxu0 %v1021
    %1728 = vmatpush.msra.mxu0 %v1016
    %1729 = vmatpush.msra.mxu0 %v1011
    %1730 = vmatpush.msra.mxu0 %v1006
    %1731 = vmatmul.f32.gmra.mxu0 %v58
    %v1732 = vpop.f32.mrf.mxu0
    %v1733 = vadd.f32 %v1713, %v1732
    %1734 = vdwg.mxu0
    %1735 = vmatpush.msra.mxu0 %v522
    %1736 = vmatpush.msra.mxu0 %v517
    %1737 = vmatpush.msra.mxu0 %v512
    %1738 = vmatpush.msra.mxu0 %v507
    %1739 = vmatpush.msra.mxu0 %v502
    %1740 = vmatpush.msra.mxu0 %v497
    %1741 = vmatpush.msra.mxu0 %v492
    %1742 = vmatpush.msra.mxu0 %v487
    %1743 = vmatpush.msra.mxu0 %v482
    %1744 = vmatpush.msra.mxu0 %v477
    %1745 = vmatpush.msra.mxu0 %v472
    %1746 = vmatpush.msra.mxu0 %v467
    %1747 = vmatpush.msra.mxu0 %v462
    %1748 = vmatpush.msra.mxu0 %v457
    %1749 = vmatpush.msra.mxu0 %v452
    %1750 = vmatpush.msra.mxu0 %v447
    %1751 = vmatmul.f32.gmra.mxu0 %v51
    %v1752 = vpop.f32.mrf.mxu0
    %v1753 = vadd.f32 %v1089, %v1752
    %1754 = vdwg.mxu0
    %1755 = vmatpush.msra.mxu0 %v602
    %1756 = vmatpush.msra.mxu0 %v597
    %1757 = vmatpush.msra.mxu0 %v592
    %1758 = vmatpush.msra.mxu0 %v587
    %1759 = vmatpush.msra.mxu0 %v582
    %1760 = vmatpush.msra.mxu0 %v577
    %1761 = vmatpush.msra.mxu0 %v572
    %1762 = vmatpush.msra.mxu0 %v567
    %1763 = vmatpush.msra.mxu0 %v562
    %1764 = vmatpush.msra.mxu0 %v557
    %1765 = vmatpush.msra.mxu0 %v552
    %1766 = vmatpush.msra.mxu0 %v547
    %1767 = vmatpush.msra.mxu0 %v542
    %1768 = vmatpush.msra.mxu0 %v537
    %1769 = vmatpush.msra.mxu0 %v532
    %1770 = vmatpush.msra.mxu0 %v527
    %1771 = vmatmul.f32.gmra.mxu0 %v52
    %v1772 = vpop.f32.mrf.mxu0
    %v1773 = vadd.f32 %v1753, %v1772
    %1774 = vdwg.mxu0
    %1775 = vmatpush.msra.mxu0 %v682
    %1776 = vmatpush.msra.mxu0 %v677
    %1777 = vmatpush.msra.mxu0 %v672
    %1778 = vmatpush.msra.mxu0 %v667
    %1779 = vmatpush.msra.mxu0 %v662
    %1780 = vmatpush.msra.mxu0 %v657
    %1781 = vmatpush.msra.mxu0 %v652
    %1782 = vmatpush.msra.mxu0 %v647
    %1783 = vmatpush.msra.mxu0 %v642
    %1784 = vmatpush.msra.mxu0 %v637
    %1785 = vmatpush.msra.mxu0 %v632
    %1786 = vmatpush.msra.mxu0 %v627
    %1787 = vmatpush.msra.mxu0 %v622
    %1788 = vmatpush.msra.mxu0 %v617
    %1789 = vmatpush.msra.mxu0 %v612
    %1790 = vmatpush.msra.mxu0 %v607
    %1791 = vmatmul.f32.gmra.mxu0 %v53
    %v1792 = vpop.f32.mrf.mxu0
    %v1793 = vadd.f32 %v1773, %v1792
    %1794 = vdwg.mxu0
    %1795 = vmatpush.msra.mxu0 %v762
    %1796 = vmatpush.msra.mxu0 %v757
    %1797 = vmatpush.msra.mxu0 %v752
    %1798 = vmatpush.msra.mxu0 %v747
    %1799 = vmatpush.msra.mxu0 %v742
    %1800 = vmatpush.msra.mxu0 %v737
    %1801 = vmatpush.msra.mxu0 %v732
    %1802 = vmatpush.msra.mxu0 %v727
    %1803 = vmatpush.msra.mxu0 %v722
    %1804 = vmatpush.msra.mxu0 %v717
    %1805 = vmatpush.msra.mxu0 %v712
    %1806 = vmatpush.msra.mxu0 %v707
    %1807 = vmatpush.msra.mxu0 %v702
    %1808 = vmatpush.msra.mxu0 %v697
    %1809 = vmatpush.msra.mxu0 %v692
    %1810 = vmatpush.msra.mxu0 %v687
    %1811 = vmatmul.f32.gmra.mxu0 %v54
    %v1812 = vpop.f32.mrf.mxu0
    %v1813 = vadd.f32 %v1793, %v1812
    %1814 = vdwg.mxu0
    %1815 = vmatpush.msra.mxu0 %v842
    %1816 = vmatpush.msra.mxu0 %v837
    %1817 = vmatpush.msra.mxu0 %v832
    %1818 = vmatpush.msra.mxu0 %v827
    %1819 = vmatpush.msra.mxu0 %v822
    %1820 = vmatpush.msra.mxu0 %v817
    %1821 = vmatpush.msra.mxu0 %v812
    %1822 = vmatpush.msra.mxu0 %v807
    %1823 = vmatpush.msra.mxu0 %v802
    %1824 = vmatpush.msra.mxu0 %v797
    %1825 = vmatpush.msra.mxu0 %v792
    %1826 = vmatpush.msra.mxu0 %v787
    %1827 = vmatpush.msra.mxu0 %v782
    %1828 = vmatpush.msra.mxu0 %v777
    %1829 = vmatpush.msra.mxu0 %v772
    %1830 = vmatpush.msra.mxu0 %v767
    %1831 = vmatmul.f32.gmra.mxu0 %v55
    %v1832 = vpop.f32.mrf.mxu0
    %v1833 = vadd.f32 %v1813, %v1832
    %1834 = vdwg.mxu0
    %1835 = vmatpush.msra.mxu0 %v922
    %1836 = vmatpush.msra.mxu0 %v917
    %1837 = vmatpush.msra.mxu0 %v912
    %1838 = vmatpush.msra.mxu0 %v907
    %1839 = vmatpush.msra.mxu0 %v902
    %1840 = vmatpush.msra.mxu0 %v897
    %1841 = vmatpush.msra.mxu0 %v892
    %1842 = vmatpush.msra.mxu0 %v887
    %1843 = vmatpush.msra.mxu0 %v882
    %1844 = vmatpush.msra.mxu0 %v877
    %1845 = vmatpush.msra.mxu0 %v872
    %1846 = vmatpush.msra.mxu0 %v867
    %1847 = vmatpush.msra.mxu0 %v862
    %1848 = vmatpush.msra.mxu0 %v857
    %1849 = vmatpush.msra.mxu0 %v852
    %1850 = vmatpush.msra.mxu0 %v847
    %1851 = vmatmul.f32.gmra.mxu0 %v56
    %v1852 = vpop.f32.mrf.mxu0
    %v1853 = vadd.f32 %v1833, %v1852
    %1854 = vdwg.mxu0
    %1855 = vmatpush.msra.mxu0 %v1002
    %1856 = vmatpush.msra.mxu0 %v997
    %1857 = vmatpush.msra.mxu0 %v992
    %1858 = vmatpush.msra.mxu0 %v987
    %1859 = vmatpush.msra.mxu0 %v982
    %1860 = vmatpush.msra.mxu0 %v977
    %1861 = vmatpush.msra.mxu0 %v972
    %1862 = vmatpush.msra.mxu0 %v967
    %1863 = vmatpush.msra.mxu0 %v962
    %1864 = vmatpush.msra.mxu0 %v957
    %1865 = vmatpush.msra.mxu0 %v952
    %1866 = vmatpush.msra.mxu0 %v947
    %1867 = vmatpush.msra.mxu0 %v942
    %1868 = vmatpush.msra.mxu0 %v937
    %1869 = vmatpush.msra.mxu0 %v932
    %1870 = vmatpush.msra.mxu0 %v927
    %1871 = vmatmul.f32.gmra.mxu0 %v57
    %v1872 = vpop.f32.mrf.mxu0
    %v1873 = vadd.f32 %v1853, %v1872
    %1874 = vdwg.mxu0
    %1875 = vmatpush.msra.mxu0 %v1082
    %1876 = vmatpush.msra.mxu0 %v1077
    %1877 = vmatpush.msra.mxu0 %v1072
    %1878 = vmatpush.msra.mxu0 %v1067
    %1879 = vmatpush.msra.mxu0 %v1062
    %1880 = vmatpush.msra.mxu0 %v1057
    %1881 = vmatpush.msra.mxu0 %v1052
    %1882 = vmatpush.msra.mxu0 %v1047
    %1883 = vmatpush.msra.mxu0 %v1042
    %1884 = vmatpush.msra.mxu0 %v1037
    %1885 = vmatpush.msra.mxu0 %v1032
    %1886 = vmatpush.msra.mxu0 %v1027
    %1887 = vmatpush.msra.mxu0 %v1022
    %1888 = vmatpush.msra.mxu0 %v1017
    %1889 = vmatpush.msra.mxu0 %v1012
    %1890 = vmatpush.msra.mxu0 %v1007
    %1891 = vmatmul.f32.gmra.mxu0 %v58
    %v1892 = vpop.f32.mrf.mxu0
    %v1893 = vadd.f32 %v1873, %v1892
    %1894 = vdwg.mxu0
    %v1895 = vld [vmem:[%s3] sm:$0x1f]
    %v1896 = vld [vmem:[%s4] sm:$0x1f]
    %v1897 = vadd.f32 %v1253, %v1413
    %v1898 = vadd.f32 %v1897, %v1573
    %v1899 = vadd.f32 %v1898, %v1733
    %vm1900 = vcmask 719872
    %v1901 = vsel %vm1900, %v1893, 0.0
    %v1902 = vadd.f32 %v1899, %v1901
    %1903 = vadd.xlane.f32.xlu0 %v1902
    %v1904 = vpop.xlane.xlu0 %1903
    %v1905 = vmul.f32 %v1253, %v1253
    %v1906 = vmul.f32 %v1413, %v1413
    %v1907 = vmul.f32 %v1573, %v1573
    %v1908 = vmul.f32 %v1733, %v1733
    %v1909 = vmul.f32 %v1893, %v1893
    %v1910 = vadd.f32 %v1905, %v1906
    %v1911 = vadd.f32 %v1910, %v1907
    %v1912 = vadd.f32 %v1911, %v1908
    %v1913 = vsel %vm1900, %v1909, 0.0
    %v1914 = vadd.f32 %v1912, %v1913
    %1915 = vadd.xlane.f32.xlu0 %v1914
    %v1916 = vpop.xlane.xlu0 %1915
    %v1917 = vmul.f32 %v1904, 0.0016666667
    %v1918 = vmul.f32 %v1916, 0.0016666667
    %v1919 = vmul.f32 %v1917, %v1917
    %v1920 = vsub.f32 %v1918, %v1919
    %v1921 = vmax.f32 %v1920, 0.0
    %v1922 = vsub.f32 %v1253, %v1917
    %v1923 = vsub.f32 %v1413, %v1917
    %v1924 = vsub.f32 %v1573, %v1917
    %v1925 = vsub.f32 %v1733, %v1917
    %v1926 = vsub.f32 %v1893, %v1917
    %v1927 = vadd.f32 %v1921, 1e-05
    %v1928 = vrsqrt.pop %v1927
    %v1929 = vmul.f32 %v1928, %v1927
    %v1930 = vmul.f32 %v1929, %v1928
    %v1931 = vmul.f32 0.5, %v1930
    %v1932 = vsub.f32 1.5, %v1931
    %v1933 = vmul.f32 %v1928, %v1932
    %vm1934 = vweird.f32 %v1927
    %vm1935 = vweird.f32 %v1928
    %vm1936 = vmor %vm1934, %vm1935
    %v1937 = vsel %vm1936, %v1928, %v1933
    %v1938 = vmul.f32 %v1922, %v1937
    %v1939 = vmul.f32 %v1923, %v1937
    %v1940 = vmul.f32 %v1924, %v1937
    %v1941 = vmul.f32 %v1925, %v1937
    %v1942 = vmul.f32 %v1926, %v1937
    %v1944 = vperm.slane %v1895, 0
    %v1945 = vperm.slane %v1895, 1
    %v1946 = vperm.slane %v1895, 2
    %v1947 = vperm.slane %v1895, 3
    %v1948 = vperm.slane %v1895, 4
    %v1954 = vmul.f32 %v1938, %v1944
    %v1955 = vmul.f32 %v1939, %v1945
    %v1956 = vmul.f32 %v1940, %v1946
    %v1957 = vmul.f32 %v1941, %v1947
    %v1958 = vmul.f32 %v1942, %v1948
    %v1960 = vperm.slane %v1896, 0
    %v1961 = vperm.slane %v1896, 1
    %v1962 = vperm.slane %v1896, 2
    %v1963 = vperm.slane %v1896, 3
    %v1964 = vperm.slane %v1896, 4
    %v1970 = vadd.f32 %v1954, %v1960
    %v1971 = vadd.f32 %v1955, %v1961
    %v1972 = vadd.f32 %v1956, %v1962
    %v1973 = vadd.f32 %v1957, %v1963
    %v1974 = vadd.f32 %v1958, %v1964
    %v1975 = vmax.f32 %v1970, 0.0
    %v1976 = vmax.f32 %v1971, 0.0
    %v1977 = vmax.f32 %v1972, 0.0
    %v1978 = vmax.f32 %v1973, 0.0
    %v1979 = vmax.f32 %v1974, 0.0
    %v1980 = vld [vmem:[%s5] sm:$0xff]
    %v1981 = vld [vmem:[%s5 + $0x8] sm:$0xff]
    %v1982 = vld [vmem:[%s5 + $0x10] sm:$0xff]
    %v1983 = vld [vmem:[%s5 + $0x18] sm:$0xff]
    %v1984 = vld [vmem:[%s5 + $0x20] sm:$0xff]
    %v1985 = vld [vmem:[%s5 + $0x28] sm:$0xff]
    %v1986 = vld [vmem:[%s5 + $0x30] sm:$0xff]
    %v1987 = vld [vmem:[%s5 + $0x38] sm:$0xff]
    %v1988 = vld [vmem:[%s5 + $0x40] sm:$0xff]
    %v1989 = vld [vmem:[%s5 + $0x48] sm:$0xff]
    %v1990 = vld [vmem:[%s5 + $0x50] sm:$0xff]
    %v1991 = vld [vmem:[%s5 + $0x58] sm:$0xff]
    %v1992 = vld [vmem:[%s5 + $0x60] sm:$0xff]
    %v1993 = vld [vmem:[%s5 + $0x68] sm:$0xff]
    %v1994 = vld [vmem:[%s5 + $0x70] sm:$0xff]
    %v1995 = vld [vmem:[%s5 + $0x78] sm:$0xff]
    %v1996 = vld [vmem:[%s5 + $0x80] sm:$0xff]
    %v1997 = vld [vmem:[%s5 + $0x88] sm:$0xff]
    %v1998 = vld [vmem:[%s5 + $0x90] sm:$0xff]
    %v1999 = vld [vmem:[%s5 + $0x98] sm:$0xff]
    %v2000 = vld [vmem:[%s5 + $0xa0] sm:$0xff]
    %v2001 = vld [vmem:[%s5 + $0xa8] sm:$0xff]
    %v2002 = vld [vmem:[%s5 + $0xb0] sm:$0xff]
    %v2003 = vld [vmem:[%s5 + $0xb8] sm:$0xff]
    %v2004 = vld [vmem:[%s5 + $0xc0] sm:$0xff]
    %v2005 = vld [vmem:[%s5 + $0xc8] sm:$0xff]
    %v2006 = vld [vmem:[%s5 + $0xd0] sm:$0xff]
    %v2007 = vld [vmem:[%s5 + $0xd8] sm:$0xff]
    %v2008 = vld [vmem:[%s5 + $0xe0] sm:$0xff]
    %v2009 = vld [vmem:[%s5 + $0xe8] sm:$0xff]
    %v2010 = vld [vmem:[%s5 + $0xf0] sm:$0xff]
    %v2011 = vld [vmem:[%s5 + $0xf8] sm:$0xff]
    %v2012 = vld [vmem:[%s5 + $0x100] sm:$0xff]
    %v2013 = vld [vmem:[%s5 + $0x108] sm:$0xff]
    %v2014 = vld [vmem:[%s5 + $0x110] sm:$0xff]
    %v2015 = vld [vmem:[%s5 + $0x118] sm:$0xff]
    %v2016 = vld [vmem:[%s5 + $0x120] sm:$0xff]
    %v2017 = vld [vmem:[%s5 + $0x128] sm:$0xff]
    %v2018 = vld [vmem:[%s5 + $0x130] sm:$0xff]
    %v2019 = vld [vmem:[%s5 + $0x138] sm:$0xff]
    %v2020 = vld [vmem:[%s5 + $0x140] sm:$0xff]
    %v2021 = vld [vmem:[%s5 + $0x148] sm:$0xff]
    %v2022 = vld [vmem:[%s5 + $0x150] sm:$0xff]
    %v2023 = vld [vmem:[%s5 + $0x158] sm:$0xff]
    %v2024 = vld [vmem:[%s5 + $0x160] sm:$0xff]
    %v2025 = vld [vmem:[%s5 + $0x168] sm:$0xff]
    %v2026 = vld [vmem:[%s5 + $0x170] sm:$0xff]
    %v2027 = vld [vmem:[%s5 + $0x178] sm:$0xff]
    %v2028 = vld [vmem:[%s5 + $0x180] sm:$0xff]
    %v2029 = vld [vmem:[%s5 + $0x188] sm:$0xff]
    %v2030 = vld [vmem:[%s5 + $0x190] sm:$0xff]
    %v2031 = vld [vmem:[%s5 + $0x198] sm:$0xff]
    %v2032 = vld [vmem:[%s5 + $0x1a0] sm:$0xff]
    %v2033 = vld [vmem:[%s5 + $0x1a8] sm:$0xff]
    %v2034 = vld [vmem:[%s5 + $0x1b0] sm:$0xff]
    %v2035 = vld [vmem:[%s5 + $0x1b8] sm:$0xff]
    %v2036 = vld [vmem:[%s5 + $0x1c0] sm:$0xff]
    %v2037 = vld [vmem:[%s5 + $0x1c8] sm:$0xff]
    %v2038 = vld [vmem:[%s5 + $0x1d0] sm:$0xff]
    %v2039 = vld [vmem:[%s5 + $0x1d8] sm:$0xff]
    %v2040 = vld [vmem:[%s5 + $0x1e0] sm:$0xff]
    %v2041 = vld [vmem:[%s5 + $0x1e8] sm:$0xff]
    %v2042 = vld [vmem:[%s5 + $0x1f0] sm:$0xff]
    %v2043 = vld [vmem:[%s5 + $0x1f8] sm:$0xff]
    %v2044 = vld [vmem:[%s5 + $0x200] sm:$0xff]
    %v2045 = vld [vmem:[%s5 + $0x208] sm:$0xff]
    %v2046 = vld [vmem:[%s5 + $0x210] sm:$0xff]
    %v2047 = vld [vmem:[%s5 + $0x218] sm:$0xff]
    %v2048 = vld [vmem:[%s5 + $0x220] sm:$0xff]
    %v2049 = vld [vmem:[%s5 + $0x228] sm:$0xff]
    %v2050 = vld [vmem:[%s5 + $0x230] sm:$0xff]
    %v2051 = vld [vmem:[%s5 + $0x238] sm:$0xff]
    %v2052 = vld [vmem:[%s5 + $0x240] sm:$0xff]
    %v2053 = vld [vmem:[%s5 + $0x248] sm:$0xff]
    %v2054 = vld [vmem:[%s5 + $0x250] sm:$0xff]
    %v2055 = vunpack.c.l.bf16 %v1980
    %v2056 = vunpack.c.h.bf16 %v1980
    %v2057 = vunpack.c.l.bf16 %v1981
    %v2058 = vunpack.c.h.bf16 %v1981
    %v2059 = vunpack.c.l.bf16 %v1982
    %v2060 = vunpack.c.h.bf16 %v1982
    %v2061 = vunpack.c.l.bf16 %v1983
    %v2062 = vunpack.c.h.bf16 %v1983
    %v2063 = vunpack.c.l.bf16 %v1984
    %v2064 = vunpack.c.h.bf16 %v1984
    %v2065 = vunpack.c.l.bf16 %v1985
    %v2066 = vunpack.c.h.bf16 %v1985
    %v2067 = vunpack.c.l.bf16 %v1986
    %v2068 = vunpack.c.h.bf16 %v1986
    %v2069 = vunpack.c.l.bf16 %v1987
    %v2070 = vunpack.c.h.bf16 %v1987
    %v2071 = vunpack.c.l.bf16 %v1988
    %v2072 = vunpack.c.h.bf16 %v1988
    %v2073 = vunpack.c.l.bf16 %v1989
    %v2074 = vunpack.c.h.bf16 %v1989
    %v2075 = vunpack.c.l.bf16 %v1990
    %v2076 = vunpack.c.h.bf16 %v1990
    %v2077 = vunpack.c.l.bf16 %v1991
    %v2078 = vunpack.c.h.bf16 %v1991
    %v2079 = vunpack.c.l.bf16 %v1992
    %v2080 = vunpack.c.h.bf16 %v1992
    %v2081 = vunpack.c.l.bf16 %v1993
    %v2082 = vunpack.c.h.bf16 %v1993
    %v2083 = vunpack.c.l.bf16 %v1994
    %v2084 = vunpack.c.h.bf16 %v1994
    %v2085 = vunpack.c.l.bf16 %v1995
    %v2086 = vunpack.c.h.bf16 %v1995
    %v2087 = vunpack.c.l.bf16 %v1996
    %v2088 = vunpack.c.h.bf16 %v1996
    %v2089 = vunpack.c.l.bf16 %v1997
    %v2090 = vunpack.c.h.bf16 %v1997
    %v2091 = vunpack.c.l.bf16 %v1998
    %v2092 = vunpack.c.h.bf16 %v1998
    %v2093 = vunpack.c.l.bf16 %v1999
    %v2094 = vunpack.c.h.bf16 %v1999
    %v2095 = vunpack.c.l.bf16 %v2000
    %v2096 = vunpack.c.h.bf16 %v2000
    %v2097 = vunpack.c.l.bf16 %v2001
    %v2098 = vunpack.c.h.bf16 %v2001
    %v2099 = vunpack.c.l.bf16 %v2002
    %v2100 = vunpack.c.h.bf16 %v2002
    %v2101 = vunpack.c.l.bf16 %v2003
    %v2102 = vunpack.c.h.bf16 %v2003
    %v2103 = vunpack.c.l.bf16 %v2004
    %v2104 = vunpack.c.h.bf16 %v2004
    %v2105 = vunpack.c.l.bf16 %v2005
    %v2106 = vunpack.c.h.bf16 %v2005
    %v2107 = vunpack.c.l.bf16 %v2006
    %v2108 = vunpack.c.h.bf16 %v2006
    %v2109 = vunpack.c.l.bf16 %v2007
    %v2110 = vunpack.c.h.bf16 %v2007
    %v2111 = vunpack.c.l.bf16 %v2008
    %v2112 = vunpack.c.h.bf16 %v2008
    %v2113 = vunpack.c.l.bf16 %v2009
    %v2114 = vunpack.c.h.bf16 %v2009
    %v2115 = vunpack.c.l.bf16 %v2010
    %v2116 = vunpack.c.h.bf16 %v2010
    %v2117 = vunpack.c.l.bf16 %v2011
    %v2118 = vunpack.c.h.bf16 %v2011
    %v2119 = vunpack.c.l.bf16 %v2012
    %v2120 = vunpack.c.h.bf16 %v2012
    %v2121 = vunpack.c.l.bf16 %v2013
    %v2122 = vunpack.c.h.bf16 %v2013
    %v2123 = vunpack.c.l.bf16 %v2014
    %v2124 = vunpack.c.h.bf16 %v2014
    %v2125 = vunpack.c.l.bf16 %v2015
    %v2126 = vunpack.c.h.bf16 %v2015
    %v2127 = vunpack.c.l.bf16 %v2016
    %v2128 = vunpack.c.h.bf16 %v2016
    %v2129 = vunpack.c.l.bf16 %v2017
    %v2130 = vunpack.c.h.bf16 %v2017
    %v2131 = vunpack.c.l.bf16 %v2018
    %v2132 = vunpack.c.h.bf16 %v2018
    %v2133 = vunpack.c.l.bf16 %v2019
    %v2134 = vunpack.c.h.bf16 %v2019
    %v2135 = vunpack.c.l.bf16 %v2020
    %v2136 = vunpack.c.h.bf16 %v2020
    %v2137 = vunpack.c.l.bf16 %v2021
    %v2138 = vunpack.c.h.bf16 %v2021
    %v2139 = vunpack.c.l.bf16 %v2022
    %v2140 = vunpack.c.h.bf16 %v2022
    %v2141 = vunpack.c.l.bf16 %v2023
    %v2142 = vunpack.c.h.bf16 %v2023
    %v2143 = vunpack.c.l.bf16 %v2024
    %v2144 = vunpack.c.h.bf16 %v2024
    %v2145 = vunpack.c.l.bf16 %v2025
    %v2146 = vunpack.c.h.bf16 %v2025
    %v2147 = vunpack.c.l.bf16 %v2026
    %v2148 = vunpack.c.h.bf16 %v2026
    %v2149 = vunpack.c.l.bf16 %v2027
    %v2150 = vunpack.c.h.bf16 %v2027
    %v2151 = vunpack.c.l.bf16 %v2028
    %v2152 = vunpack.c.h.bf16 %v2028
    %v2153 = vunpack.c.l.bf16 %v2029
    %v2154 = vunpack.c.h.bf16 %v2029
    %v2155 = vunpack.c.l.bf16 %v2030
    %v2156 = vunpack.c.h.bf16 %v2030
    %v2157 = vunpack.c.l.bf16 %v2031
    %v2158 = vunpack.c.h.bf16 %v2031
    %v2159 = vunpack.c.l.bf16 %v2032
    %v2160 = vunpack.c.h.bf16 %v2032
    %v2161 = vunpack.c.l.bf16 %v2033
    %v2162 = vunpack.c.h.bf16 %v2033
    %v2163 = vunpack.c.l.bf16 %v2034
    %v2164 = vunpack.c.h.bf16 %v2034
    %v2165 = vunpack.c.l.bf16 %v2035
    %v2166 = vunpack.c.h.bf16 %v2035
    %v2167 = vunpack.c.l.bf16 %v2036
    %v2168 = vunpack.c.h.bf16 %v2036
    %v2169 = vunpack.c.l.bf16 %v2037
    %v2170 = vunpack.c.h.bf16 %v2037
    %v2171 = vunpack.c.l.bf16 %v2038
    %v2172 = vunpack.c.h.bf16 %v2038
    %v2173 = vunpack.c.l.bf16 %v2039
    %v2174 = vunpack.c.h.bf16 %v2039
    %v2175 = vunpack.c.l.bf16 %v2040
    %v2176 = vunpack.c.h.bf16 %v2040
    %v2177 = vunpack.c.l.bf16 %v2041
    %v2178 = vunpack.c.h.bf16 %v2041
    %v2179 = vunpack.c.l.bf16 %v2042
    %v2180 = vunpack.c.h.bf16 %v2042
    %v2181 = vunpack.c.l.bf16 %v2043
    %v2182 = vunpack.c.h.bf16 %v2043
    %v2183 = vunpack.c.l.bf16 %v2044
    %v2184 = vunpack.c.h.bf16 %v2044
    %v2185 = vunpack.c.l.bf16 %v2045
    %v2186 = vunpack.c.h.bf16 %v2045
    %v2187 = vunpack.c.l.bf16 %v2046
    %v2188 = vunpack.c.h.bf16 %v2046
    %v2189 = vunpack.c.l.bf16 %v2047
    %v2190 = vunpack.c.h.bf16 %v2047
    %v2191 = vunpack.c.l.bf16 %v2048
    %v2192 = vunpack.c.h.bf16 %v2048
    %v2193 = vunpack.c.l.bf16 %v2049
    %v2194 = vunpack.c.h.bf16 %v2049
    %v2195 = vunpack.c.l.bf16 %v2050
    %v2196 = vunpack.c.h.bf16 %v2050
    %v2197 = vunpack.c.l.bf16 %v2051
    %v2198 = vunpack.c.h.bf16 %v2051
    %v2199 = vunpack.c.l.bf16 %v2052
    %v2200 = vunpack.c.h.bf16 %v2052
    %v2201 = vunpack.c.l.bf16 %v2053
    %v2202 = vunpack.c.h.bf16 %v2053
    %v2203 = vunpack.c.l.bf16 %v2054
    %v2204 = vunpack.c.h.bf16 %v2054
    %v2205 = vld [vmem:[%s6] sm:$0x3]
    %v2207 = vperm.slane %v2205, 0
    %v2208 = vperm.slane %v2205, 1
    %v2212 = vsel %vm1900, %v1979, 0
    %2214 = vmatpush.msra.mxu0 %v2085
    %2215 = vmatpush.msra.mxu0 %v2083
    %2216 = vmatpush.msra.mxu0 %v2081
    %2217 = vmatpush.msra.mxu0 %v2079
    %2218 = vmatpush.msra.mxu0 %v2077
    %2219 = vmatpush.msra.mxu0 %v2075
    %2220 = vmatpush.msra.mxu0 %v2073
    %2221 = vmatpush.msra.mxu0 %v2071
    %2222 = vmatpush.msra.mxu0 %v2069
    %2223 = vmatpush.msra.mxu0 %v2067
    %2224 = vmatpush.msra.mxu0 %v2065
    %2225 = vmatpush.msra.mxu0 %v2063
    %2226 = vmatpush.msra.mxu0 %v2061
    %2227 = vmatpush.msra.mxu0 %v2059
    %2228 = vmatpush.msra.mxu0 %v2057
    %2229 = vmatpush.msra.mxu0 %v2055
    %2230 = vmatmul.f32.gmra.mxu0 %v1975
    %v2231 = vpop.f32.mrf.mxu0
    %v2232 = vadd.f32 %v2207, %v2231
    %2233 = vdwg.mxu0
    %2234 = vmatpush.msra.mxu0 %v2117
    %2235 = vmatpush.msra.mxu0 %v2115
    %2236 = vmatpush.msra.mxu0 %v2113
    %2237 = vmatpush.msra.mxu0 %v2111
    %2238 = vmatpush.msra.mxu0 %v2109
    %2239 = vmatpush.msra.mxu0 %v2107
    %2240 = vmatpush.msra.mxu0 %v2105
    %2241 = vmatpush.msra.mxu0 %v2103
    %2242 = vmatpush.msra.mxu0 %v2101
    %2243 = vmatpush.msra.mxu0 %v2099
    %2244 = vmatpush.msra.mxu0 %v2097
    %2245 = vmatpush.msra.mxu0 %v2095
    %2246 = vmatpush.msra.mxu0 %v2093
    %2247 = vmatpush.msra.mxu0 %v2091
    %2248 = vmatpush.msra.mxu0 %v2089
    %2249 = vmatpush.msra.mxu0 %v2087
    %2250 = vmatmul.f32.gmra.mxu0 %v1976
    %v2251 = vpop.f32.mrf.mxu0
    %v2252 = vadd.f32 %v2232, %v2251
    %2253 = vdwg.mxu0
    %2254 = vmatpush.msra.mxu0 %v2149
    %2255 = vmatpush.msra.mxu0 %v2147
    %2256 = vmatpush.msra.mxu0 %v2145
    %2257 = vmatpush.msra.mxu0 %v2143
    %2258 = vmatpush.msra.mxu0 %v2141
    %2259 = vmatpush.msra.mxu0 %v2139
    %2260 = vmatpush.msra.mxu0 %v2137
    %2261 = vmatpush.msra.mxu0 %v2135
    %2262 = vmatpush.msra.mxu0 %v2133
    %2263 = vmatpush.msra.mxu0 %v2131
    %2264 = vmatpush.msra.mxu0 %v2129
    %2265 = vmatpush.msra.mxu0 %v2127
    %2266 = vmatpush.msra.mxu0 %v2125
    %2267 = vmatpush.msra.mxu0 %v2123
    %2268 = vmatpush.msra.mxu0 %v2121
    %2269 = vmatpush.msra.mxu0 %v2119
    %2270 = vmatmul.f32.gmra.mxu0 %v1977
    %v2271 = vpop.f32.mrf.mxu0
    %v2272 = vadd.f32 %v2252, %v2271
    %2273 = vdwg.mxu0
    %2274 = vmatpush.msra.mxu0 %v2181
    %2275 = vmatpush.msra.mxu0 %v2179
    %2276 = vmatpush.msra.mxu0 %v2177
    %2277 = vmatpush.msra.mxu0 %v2175
    %2278 = vmatpush.msra.mxu0 %v2173
    %2279 = vmatpush.msra.mxu0 %v2171
    %2280 = vmatpush.msra.mxu0 %v2169
    %2281 = vmatpush.msra.mxu0 %v2167
    %2282 = vmatpush.msra.mxu0 %v2165
    %2283 = vmatpush.msra.mxu0 %v2163
    %2284 = vmatpush.msra.mxu0 %v2161
    %2285 = vmatpush.msra.mxu0 %v2159
    %2286 = vmatpush.msra.mxu0 %v2157
    %2287 = vmatpush.msra.mxu0 %v2155
    %2288 = vmatpush.msra.mxu0 %v2153
    %2289 = vmatpush.msra.mxu0 %v2151
    %2290 = vmatmul.f32.gmra.mxu0 %v1978
    %v2291 = vpop.f32.mrf.mxu0
    %v2292 = vadd.f32 %v2272, %v2291
    %2293 = vdwg.mxu0
    %2294 = vmatpush.msra.mxu0 0.0
    %2295 = vmatpush.msra.mxu0 0.0
    %2296 = vmatpush.msra.mxu0 0.0
    %2297 = vmatpush.msra.mxu0 0.0
    %2298 = vmatpush.msra.mxu0 0.0
    %2299 = vmatpush.msra.mxu0 %v2203
    %2300 = vmatpush.msra.mxu0 %v2201
    %2301 = vmatpush.msra.mxu0 %v2199
    %2302 = vmatpush.msra.mxu0 %v2197
    %2303 = vmatpush.msra.mxu0 %v2195
    %2304 = vmatpush.msra.mxu0 %v2193
    %2305 = vmatpush.msra.mxu0 %v2191
    %2306 = vmatpush.msra.mxu0 %v2189
    %2307 = vmatpush.msra.mxu0 %v2187
    %2308 = vmatpush.msra.mxu0 %v2185
    %2309 = vmatpush.msra.mxu0 %v2183
    %2310 = vmatmul.f32.gmra.mxu0 %v2212
    %v2311 = vpop.f32.mrf.mxu0
    %v2312 = vadd.f32 %v2292, %v2311
    %2313 = vdwg.mxu0
    %2314 = vmatpush.msra.mxu0 %v2086
    %2315 = vmatpush.msra.mxu0 %v2084
    %2316 = vmatpush.msra.mxu0 %v2082
    %2317 = vmatpush.msra.mxu0 %v2080
    %2318 = vmatpush.msra.mxu0 %v2078
    %2319 = vmatpush.msra.mxu0 %v2076
    %2320 = vmatpush.msra.mxu0 %v2074
    %2321 = vmatpush.msra.mxu0 %v2072
    %2322 = vmatpush.msra.mxu0 %v2070
    %2323 = vmatpush.msra.mxu0 %v2068
    %2324 = vmatpush.msra.mxu0 %v2066
    %2325 = vmatpush.msra.mxu0 %v2064
    %2326 = vmatpush.msra.mxu0 %v2062
    %2327 = vmatpush.msra.mxu0 %v2060
    %2328 = vmatpush.msra.mxu0 %v2058
    %2329 = vmatpush.msra.mxu0 %v2056
    %2330 = vmatmul.f32.gmra.mxu0 %v1975
    %v2331 = vpop.f32.mrf.mxu0
    %v2332 = vadd.f32 %v2208, %v2331
    %2333 = vdwg.mxu0
    %2334 = vmatpush.msra.mxu0 %v2118
    %2335 = vmatpush.msra.mxu0 %v2116
    %2336 = vmatpush.msra.mxu0 %v2114
    %2337 = vmatpush.msra.mxu0 %v2112
    %2338 = vmatpush.msra.mxu0 %v2110
    %2339 = vmatpush.msra.mxu0 %v2108
    %2340 = vmatpush.msra.mxu0 %v2106
    %2341 = vmatpush.msra.mxu0 %v2104
    %2342 = vmatpush.msra.mxu0 %v2102
    %2343 = vmatpush.msra.mxu0 %v2100
    %2344 = vmatpush.msra.mxu0 %v2098
    %2345 = vmatpush.msra.mxu0 %v2096
    %2346 = vmatpush.msra.mxu0 %v2094
    %2347 = vmatpush.msra.mxu0 %v2092
    %2348 = vmatpush.msra.mxu0 %v2090
    %2349 = vmatpush.msra.mxu0 %v2088
    %2350 = vmatmul.f32.gmra.mxu0 %v1976
    %v2351 = vpop.f32.mrf.mxu0
    %v2352 = vadd.f32 %v2332, %v2351
    %2353 = vdwg.mxu0
    %2354 = vmatpush.msra.mxu0 %v2150
    %2355 = vmatpush.msra.mxu0 %v2148
    %2356 = vmatpush.msra.mxu0 %v2146
    %2357 = vmatpush.msra.mxu0 %v2144
    %2358 = vmatpush.msra.mxu0 %v2142
    %2359 = vmatpush.msra.mxu0 %v2140
    %2360 = vmatpush.msra.mxu0 %v2138
    %2361 = vmatpush.msra.mxu0 %v2136
    %2362 = vmatpush.msra.mxu0 %v2134
    %2363 = vmatpush.msra.mxu0 %v2132
    %2364 = vmatpush.msra.mxu0 %v2130
    %2365 = vmatpush.msra.mxu0 %v2128
    %2366 = vmatpush.msra.mxu0 %v2126
    %2367 = vmatpush.msra.mxu0 %v2124
    %2368 = vmatpush.msra.mxu0 %v2122
    %2369 = vmatpush.msra.mxu0 %v2120
    %2370 = vmatmul.f32.gmra.mxu0 %v1977
    %v2371 = vpop.f32.mrf.mxu0
    %v2372 = vadd.f32 %v2352, %v2371
    %2373 = vdwg.mxu0
    %2374 = vmatpush.msra.mxu0 %v2182
    %2375 = vmatpush.msra.mxu0 %v2180
    %2376 = vmatpush.msra.mxu0 %v2178
    %2377 = vmatpush.msra.mxu0 %v2176
    %2378 = vmatpush.msra.mxu0 %v2174
    %2379 = vmatpush.msra.mxu0 %v2172
    %2380 = vmatpush.msra.mxu0 %v2170
    %2381 = vmatpush.msra.mxu0 %v2168
    %2382 = vmatpush.msra.mxu0 %v2166
    %2383 = vmatpush.msra.mxu0 %v2164
    %2384 = vmatpush.msra.mxu0 %v2162
    %2385 = vmatpush.msra.mxu0 %v2160
    %2386 = vmatpush.msra.mxu0 %v2158
    %2387 = vmatpush.msra.mxu0 %v2156
    %2388 = vmatpush.msra.mxu0 %v2154
    %2389 = vmatpush.msra.mxu0 %v2152
    %2390 = vmatmul.f32.gmra.mxu0 %v1978
    %v2391 = vpop.f32.mrf.mxu0
    %v2392 = vadd.f32 %v2372, %v2391
    %2393 = vdwg.mxu0
    %2394 = vmatpush.msra.mxu0 0.0
    %2395 = vmatpush.msra.mxu0 0.0
    %2396 = vmatpush.msra.mxu0 0.0
    %2397 = vmatpush.msra.mxu0 0.0
    %2398 = vmatpush.msra.mxu0 0.0
    %2399 = vmatpush.msra.mxu0 %v2204
    %2400 = vmatpush.msra.mxu0 %v2202
    %2401 = vmatpush.msra.mxu0 %v2200
    %2402 = vmatpush.msra.mxu0 %v2198
    %2403 = vmatpush.msra.mxu0 %v2196
    %2404 = vmatpush.msra.mxu0 %v2194
    %2405 = vmatpush.msra.mxu0 %v2192
    %2406 = vmatpush.msra.mxu0 %v2190
    %2407 = vmatpush.msra.mxu0 %v2188
    %2408 = vmatpush.msra.mxu0 %v2186
    %2409 = vmatpush.msra.mxu0 %v2184
    %2410 = vmatmul.f32.gmra.mxu0 %v2212
    %v2411 = vpop.f32.mrf.mxu0
    %v2412 = vadd.f32 %v2392, %v2411
    %2413 = vdwg.mxu0
    %v2414 = vld [vmem:[%s7] sm:$0x3]
    %v2415 = vld [vmem:[%s8] sm:$0x3]
    %vm2416 = vcmask 588800
    %v2417 = vsel %vm2416, %v2412, 0.0
    %v2418 = vadd.f32 %v2312, %v2417
    %2419 = vadd.xlane.f32.xlu0 %v2418
    %v2420 = vpop.xlane.xlu0 %2419
    %v2421 = vmul.f32 %v2312, %v2312
    %v2422 = vmul.f32 %v2412, %v2412
    %v2423 = vsel %vm2416, %v2422, 0.0
    %v2424 = vadd.f32 %v2421, %v2423
    %2425 = vadd.xlane.f32.xlu0 %v2424
    %v2426 = vpop.xlane.xlu0 %2425
    %v2427 = vmul.f32 %v2420, 0.005
    %v2428 = vmul.f32 %v2426, 0.005
    %v2429 = vmul.f32 %v2427, %v2427
    %v2430 = vsub.f32 %v2428, %v2429
    %v2431 = vmax.f32 %v2430, 0.0
    %v2432 = vsub.f32 %v2312, %v2427
    %v2433 = vsub.f32 %v2412, %v2427
    %v2434 = vadd.f32 %v2431, 1e-05
    %v2435 = vrsqrt.pop %v2434
    %v2436 = vmul.f32 %v2435, %v2434
    %v2437 = vmul.f32 %v2436, %v2435
    %v2438 = vmul.f32 0.5, %v2437
    %v2439 = vsub.f32 1.5, %v2438
    %v2440 = vmul.f32 %v2435, %v2439
    %vm2441 = vweird.f32 %v2434
    %vm2442 = vweird.f32 %v2435
    %vm2443 = vmor %vm2441, %vm2442
    %v2444 = vsel %vm2443, %v2435, %v2440
    %v2445 = vmul.f32 %v2432, %v2444
    %v2446 = vmul.f32 %v2433, %v2444
    %v2448 = vperm.slane %v2414, 0
    %v2449 = vperm.slane %v2414, 1
    %v2452 = vmul.f32 %v2445, %v2448
    %v2453 = vmul.f32 %v2446, %v2449
    %v2455 = vperm.slane %v2415, 0
    %v2456 = vperm.slane %v2415, 1
    %v2459 = vadd.f32 %v2452, %v2455
    %v2460 = vadd.f32 %v2453, %v2456
    %v2461 = vmax.f32 %v2459, 0.0
    %v2462 = vmax.f32 %v2460, 0.0
    %v2463 = vld [vmem:[%s9] sm:$0xf]
    %v2464 = vld [vmem:[%s9 + $0x4] sm:$0xf]
    %v2465 = vld [vmem:[%s9 + $0x8] sm:$0xf]
    %v2466 = vld [vmem:[%s9 + $0xc] sm:$0xf]
    %v2467 = vld [vmem:[%s9 + $0x10] sm:$0xf]
    %v2468 = vld [vmem:[%s9 + $0x14] sm:$0xf]
    %v2469 = vld [vmem:[%s9 + $0x18] sm:$0xf]
    %v2470 = vld [vmem:[%s9 + $0x1c] sm:$0xf]
    %v2471 = vld [vmem:[%s9 + $0x20] sm:$0xf]
    %v2472 = vld [vmem:[%s9 + $0x24] sm:$0xf]
    %v2473 = vld [vmem:[%s9 + $0x28] sm:$0xf]
    %v2474 = vld [vmem:[%s9 + $0x2c] sm:$0xf]
    %v2475 = vld [vmem:[%s9 + $0x30] sm:$0xf]
    %v2476 = vld [vmem:[%s9 + $0x34] sm:$0xf]
    %v2477 = vld [vmem:[%s9 + $0x38] sm:$0xf]
    %v2478 = vld [vmem:[%s9 + $0x3c] sm:$0xf]
    %v2479 = vld [vmem:[%s9 + $0x40] sm:$0xf]
    %v2480 = vld [vmem:[%s9 + $0x44] sm:$0xf]
    %v2481 = vld [vmem:[%s9 + $0x48] sm:$0xf]
    %v2482 = vld [vmem:[%s9 + $0x4c] sm:$0xf]
    %v2483 = vld [vmem:[%s9 + $0x50] sm:$0xf]
    %v2484 = vld [vmem:[%s9 + $0x54] sm:$0xf]
    %v2485 = vld [vmem:[%s9 + $0x58] sm:$0xf]
    %v2486 = vld [vmem:[%s9 + $0x5c] sm:$0xf]
    %v2487 = vld [vmem:[%s9 + $0x60] sm:$0xf]
    %v2488 = vunpack.c.l.bf16 %v2463
    %v2489 = vunpack.c.l.bf16 %v2464
    %v2490 = vunpack.c.l.bf16 %v2465
    %v2491 = vunpack.c.l.bf16 %v2466
    %v2492 = vunpack.c.l.bf16 %v2467
    %v2493 = vunpack.c.l.bf16 %v2468
    %v2494 = vunpack.c.l.bf16 %v2469
    %v2495 = vunpack.c.l.bf16 %v2470
    %v2496 = vunpack.c.l.bf16 %v2471
    %v2497 = vunpack.c.l.bf16 %v2472
    %v2498 = vunpack.c.l.bf16 %v2473
    %v2499 = vunpack.c.l.bf16 %v2474
    %v2500 = vunpack.c.l.bf16 %v2475
    %v2501 = vunpack.c.l.bf16 %v2476
    %v2502 = vunpack.c.l.bf16 %v2477
    %v2503 = vunpack.c.l.bf16 %v2478
    %v2504 = vunpack.c.l.bf16 %v2479
    %v2505 = vunpack.c.l.bf16 %v2480
    %v2506 = vunpack.c.l.bf16 %v2481
    %v2507 = vunpack.c.l.bf16 %v2482
    %v2508 = vunpack.c.l.bf16 %v2483
    %v2509 = vunpack.c.l.bf16 %v2484
    %v2510 = vunpack.c.l.bf16 %v2485
    %v2511 = vunpack.c.l.bf16 %v2486
    %v2512 = vunpack.c.l.bf16 %v2487
    %v2513 = vld [vmem:[%s10] sm:$0x1]
    %v2515 = vperm.slane %v2513, 0
    %v2518 = vsel %vm2416, %v2462, 0
    %2520 = vmatpush.msra.mxu0 %v2503
    %2521 = vmatpush.msra.mxu0 %v2502
    %2522 = vmatpush.msra.mxu0 %v2501
    %2523 = vmatpush.msra.mxu0 %v2500
    %2524 = vmatpush.msra.mxu0 %v2499
    %2525 = vmatpush.msra.mxu0 %v2498
    %2526 = vmatpush.msra.mxu0 %v2497
    %2527 = vmatpush.msra.mxu0 %v2496
    %2528 = vmatpush.msra.mxu0 %v2495
    %2529 = vmatpush.msra.mxu0 %v2494
    %2530 = vmatpush.msra.mxu0 %v2493
    %2531 = vmatpush.msra.mxu0 %v2492
    %2532 = vmatpush.msra.mxu0 %v2491
    %2533 = vmatpush.msra.mxu0 %v2490
    %2534 = vmatpush.msra.mxu0 %v2489
    %2535 = vmatpush.msra.mxu0 %v2488
    %2536 = vmatmul.f32.gmra.mxu0 %v2461
    %v2537 = vpop.f32.mrf.mxu0
    %v2538 = vadd.f32 %v2515, %v2537
    %2539 = vdwg.mxu0
    %2540 = vmatpush.msra.mxu0 0.0
    %2541 = vmatpush.msra.mxu0 0.0
    %2542 = vmatpush.msra.mxu0 0.0
    %2543 = vmatpush.msra.mxu0 0.0
    %2544 = vmatpush.msra.mxu0 0.0
    %2545 = vmatpush.msra.mxu0 0.0
    %2546 = vmatpush.msra.mxu0 0.0
    %2547 = vmatpush.msra.mxu0 %v2512
    %2548 = vmatpush.msra.mxu0 %v2511
    %2549 = vmatpush.msra.mxu0 %v2510
    %2550 = vmatpush.msra.mxu0 %v2509
    %2551 = vmatpush.msra.mxu0 %v2508
    %2552 = vmatpush.msra.mxu0 %v2507
    %2553 = vmatpush.msra.mxu0 %v2506
    %2554 = vmatpush.msra.mxu0 %v2505
    %2555 = vmatpush.msra.mxu0 %v2504
    %2556 = vmatmul.f32.gmra.mxu0 %v2518
    %v2557 = vpop.f32.mrf.mxu0
    %v2558 = vadd.f32 %v2538, %v2557
    %2559 = vdwg.mxu0
    %v2560 = vld [vmem:[%s11] sm:$0x1]
    %v2561 = vld [vmem:[%s12] sm:$0x1]
    %vm2562 = vcmask 818176
    %v2563 = vsel %vm2562, %v2558, 0.0
    %2564 = vadd.xlane.f32.xlu0 %v2563
    %v2565 = vpop.xlane.xlu0 %2564
    %v2566 = vmul.f32 %v2558, %v2558
    %v2567 = vsel %vm2562, %v2566, 0.0
    %2568 = vadd.xlane.f32.xlu0 %v2567
    %v2569 = vpop.xlane.xlu0 %2568
    %v2570 = vmul.f32 %v2565, 0.01
    %v2571 = vmul.f32 %v2569, 0.01
    %v2572 = vmul.f32 %v2570, %v2570
    %v2573 = vsub.f32 %v2571, %v2572
    %v2574 = vmax.f32 %v2573, 0.0
    %v2575 = vsub.f32 %v2558, %v2570
    %v2576 = vadd.f32 %v2574, 1e-05
    %v2577 = vrsqrt.pop %v2576
    %v2578 = vmul.f32 %v2577, %v2576
    %v2579 = vmul.f32 %v2578, %v2577
    %v2580 = vmul.f32 0.5, %v2579
    %v2581 = vsub.f32 1.5, %v2580
    %v2582 = vmul.f32 %v2577, %v2581
    %vm2583 = vweird.f32 %v2576
    %vm2584 = vweird.f32 %v2577
    %vm2585 = vmor %vm2583, %vm2584
    %v2586 = vsel %vm2585, %v2577, %v2582
    %v2587 = vmul.f32 %v2575, %v2586
    %v2589 = vperm.slane %v2560, 0
    %v2591 = vmul.f32 %v2587, %v2589
    %v2593 = vperm.slane %v2561, 0
    %v2595 = vadd.f32 %v2591, %v2593
    %v2596 = vmax.f32 %v2595, 0.0
    %v2597 = vld [vmem:[%s13] sm:$0xf]
    %v2598 = vld [vmem:[%s13 + $0x4] sm:$0xf]
    %v2599 = vld [vmem:[%s13 + $0x8] sm:$0xf]
    %v2600 = vld [vmem:[%s13 + $0xc] sm:$0xf]
    %v2601 = vld [vmem:[%s13 + $0x10] sm:$0xf]
    %v2602 = vld [vmem:[%s13 + $0x14] sm:$0xf]
    %v2603 = vld [vmem:[%s13 + $0x18] sm:$0xf]
    %v2604 = vld [vmem:[%s13 + $0x1c] sm:$0xf]
    %v2605 = vld [vmem:[%s13 + $0x20] sm:$0xf]
    %v2606 = vld [vmem:[%s13 + $0x24] sm:$0xf]
    %v2607 = vld [vmem:[%s13 + $0x28] sm:$0xf]
    %v2608 = vld [vmem:[%s13 + $0x2c] sm:$0xf]
    %v2609 = vld [vmem:[%s13 + $0x30] sm:$0x3]
    %v2610 = vunpack.c.l.bf16 %v2597
    %v2611 = vunpack.c.l.bf16 %v2598
    %v2612 = vunpack.c.l.bf16 %v2599
    %v2613 = vunpack.c.l.bf16 %v2600
    %v2614 = vunpack.c.l.bf16 %v2601
    %v2615 = vunpack.c.l.bf16 %v2602
    %v2616 = vunpack.c.l.bf16 %v2603
    %v2617 = vunpack.c.l.bf16 %v2604
    %v2618 = vunpack.c.l.bf16 %v2605
    %v2619 = vunpack.c.l.bf16 %v2606
    %v2620 = vunpack.c.l.bf16 %v2607
    %v2621 = vunpack.c.l.bf16 %v2608
    %v2622 = vunpack.c.l.bf16 %v2609
    %v2623 = vld [vmem:[%s14] sm:$0x1]
    %v2625 = vperm.slane %v2623, 0
    %v2628 = vsel %vm2562, %v2596, 0
    %vm2630 = vcmask 1043456
    %v2632 = vsel %vm2630, %v2622, 0
    %2634 = vmatpush.msra.mxu0 0.0
    %2635 = vmatpush.msra.mxu0 0.0
    %2636 = vmatpush.msra.mxu0 0.0
    %2637 = vmatpush.msra.mxu0 %v2632
    %2638 = vmatpush.msra.mxu0 %v2621
    %2639 = vmatpush.msra.mxu0 %v2620
    %2640 = vmatpush.msra.mxu0 %v2619
    %2641 = vmatpush.msra.mxu0 %v2618
    %2642 = vmatpush.msra.mxu0 %v2617
    %2643 = vmatpush.msra.mxu0 %v2616
    %2644 = vmatpush.msra.mxu0 %v2615
    %2645 = vmatpush.msra.mxu0 %v2614
    %2646 = vmatpush.msra.mxu0 %v2613
    %2647 = vmatpush.msra.mxu0 %v2612
    %2648 = vmatpush.msra.mxu0 %v2611
    %2649 = vmatpush.msra.mxu0 %v2610
    %2650 = vmatmul.f32.gmra.mxu0 %v2628
    %v2651 = vpop.f32.mrf.mxu0
    %v2652 = vadd.f32 %v2625, %v2651
    %2653 = vdwg.mxu0
    %v2654 = vxor.u32 %v2652, 2147483648
    %v2655 = vmul.f32 %v2654, 1.442695
    %v2656 = vpow.pop %v2655
    %v2657 = vadd.f32 %v2656, 1.0
    %v2658 = vrcp.pop %v2657
    %v2659 = vmul.f32 %v2657, %v2658
    %v2660 = vsub.f32 1.0, %v2659
    %v2661 = vmul.f32 %v2658, %v2660
    %v2662 = vadd.f32 %v2658, %v2661
    %vm2663 = vweird.f32 %v2657
    %vm2664 = vweird.f32 %v2658
    %vm2665 = vmor %vm2663, %vm2664
    %v2666 = vsel %vm2665, %v2658, %v2662
    %v2667 = vand.u32 2147483647, %v2657
    %vm2668 = vcmp.eq.f32.partialorder %v2667, 8.507059e+37
    %v2669 = vand.u32 %v2657, 2147483648
    %v2670 = vor.u32 1.1754944e-38, %v2669
    %v2671 = vsel %vm2668, %v2670, %v2666
    %v2672 = vmul.f32 1.0, %v2671
    %2673 = vst [vmem:[#allocation2] sm:$0xff] %v2672
    // Predicated region
    $region62: #{tpu_custom_call.1} parent=1 // pred_check
      _
    $region63: #{tpu_custom_call.1} parent=1 // pred_check_branch
      %2675 = sbr.rel (0) target = $region65
    $region64: #{tpu_custom_call.1} parent=1 // pred_region
      %2677 = vsyncadd [#allocation3], 0
      %s2679 = sshll.u32 [#allocation2], 4
      %s2680 = int_to_ptr.vmem [resolvable:$true] %s2679
      %s2681 = sshll.u32 %s15, 4
      %s2682 = int_to_ptr.hbm [resolvable:$true] %s2681
      %2684 = dma.vmem_to_hbm [thread:$0]  %s2680, 128, %s2682, [#allocation3]
    $region65: #{tpu_custom_call.1} parent=1 // pred_fallthru
      _
    // Predicated region
    $region66: #{tpu_custom_call.1} parent=1 // pred_check
      _
    $region67: #{tpu_custom_call.1} parent=1 // pred_check_branch
      %2686 = sbr.rel (0) target = $region69
    $region68: #{tpu_custom_call.1} parent=1 // pred_region
      %2688 = dma.done [#allocation3], 128
    $region69: #{tpu_custom_call.1} parent=1 // pred_fallthru
      _
    %2689 = vsyncpa [#allocation3], 1

</llo_original>
